<compile_context>
chip_gen: v7x
topology: tpu7x:2x2x1
jax: 0.10.0
libtpu: 0.0.40
codegen_flags: <defaults>
</compile_context>

<pallas_src>
import jax
import jax.numpy as jnp
from jax import lax
from jax.experimental import pallas as pl
from jax.experimental.pallas import tpu as pltpu

B = 2            # batch
H = W = 28       # input spatial (implied by Linear(14*14*4, 30))
OH = OW = 14     # conv output spatial
P = OH * OW      # 196 spatial positions per channel
PPAD = 256       # lane-padded spatial positions (196 -> 256 = 2 vregs)
KC = 4           # kh*kw taps (in_ch = 1)
OC = 4           # conv out channels
HID = 30         # clayer_1 width (kept unpadded -> 4x smaller w1 DMA, exact f32)
OUT = 10
KFLAT = OC * PPAD   # 1024 = contraction length of the flattened fc1 matmul


def hybrid_kernel(wc_ref, bc_ref, patches_ref, w1_ref, b1_ref, w2_ref, b2_ref,
                  out_ref):
    # wc_ref: SMEM (OC, KC)   bc_ref: SMEM (OC,)    -- conv weights as scalars
    # patches_ref: VMEM (KC, B, PPAD)               -- im2col, zero-padded lanes
    # w1_ref: VMEM (KFLAT, HID)   b1_ref: VMEM (1, HID)
    # w2_ref: VMEM (HID, OUT)     b2_ref: VMEM (1, OUT)
    p = patches_ref[...]                                        # (KC, B, PPAD)

    # conv1 + ReLU on the VPU: 4 out-channels x 4 taps = 16 broadcast FMAs.
    # Each channel slab is (B, 256) = vreg-aligned along lanes, so the lane
    # concatenation into the flat fc1 activation is essentially free.
    conv_flat = jnp.concatenate(
        [jnp.maximum(wc_ref[c, 0] * p[0] + wc_ref[c, 1] * p[1]
                     + wc_ref[c, 2] * p[2] + wc_ref[c, 3] * p[3]
                     + bc_ref[c], 0.0)
         for c in range(OC)], axis=-1)                          # (B, KFLAT)

    # clayer_1 + ReLU: ONE MXU matmul with K=1024.  Zero w1 rows for the padded
    # spatial lanes (p >= 196) null the ReLU(bias) contamination there.
    h = jnp.maximum(
        jnp.dot(conv_flat, w1_ref[...],
                preferred_element_type=jnp.float32) + b1_ref[...], 0.0)  # (B, HID)

    # drop3: Dropout(0.5) is identity in eval mode; checkpoint is a forward
    # no-op.  fc4 + single (B, OUT) store.
    out_ref[...] = (jnp.dot(h, w2_ref[...],
                            preferred_element_type=jnp.float32)
                    + b2_ref[...])                              # (B, OUT)


def prepare_params(params):
    """One-time parameter layout prep (hoisted out of the per-call forward)."""
    wc, bc, w1, b1, w2, b2 = params
    wc2 = wc.reshape(OC, KC).astype(jnp.float32)                # (4, 4)
    bc1 = bc.reshape(OC).astype(jnp.float32)                    # (4,)
    # PyTorch Flatten of (B, OC, 14, 14) indexes c*196 + p, so regroup
    # W1 (HID, 784) -> (OC, P, HID), zero-pad P->PPAD (keeps the padded conv
    # lanes inert), then flatten to the (KFLAT, HID) rhs of the single fc1 dot.
    w1r = jnp.transpose(w1).reshape(OC, P, HID).astype(jnp.float32)
    w1p = (jnp.zeros((OC, PPAD, HID), jnp.float32)
           .at[:, :P, :].set(w1r)
           .reshape(KFLAT, HID))                                # (1024, 30) ~123 KiB
    b1p = b1.reshape(1, HID).astype(jnp.float32)
    w2p = jnp.transpose(w2).astype(jnp.float32)                 # (30, 10)
    b2p = b2.reshape(1, OUT).astype(jnp.float32)
    return wc2, bc1, w1p, b1p, w2p, b2p


@jax.jit
def hybrid_forward(x, prepped):
    wc2, bc1, w1p, b1p, w2p, b2p = prepped
    # im2col for the 2x2 / stride-2 / valid conv (single input channel):
    # patches[k, b, i*14+j] = x[b, 0, 2i+kh, 2j+kw] with k = kh*2 + kw.
    # Kept in the jitted wrapper (~6 KiB of input); in-kernel stride-2 lane
    # extraction has no clean Mosaic lowering.
    xp = x[:, 0].reshape(B, OH, 2, OW, 2)                        # (B, h, kh, w, kw)
    patches = xp.transpose(2, 4, 0, 1, 3).reshape(KC, B, P)
    patches = jnp.pad(patches, ((0, 0), (0, 0), (0, PPAD - P)))  # lane-pad 196->256

    smem = pl.BlockSpec(memory_space=pltpu.MemorySpace.SMEM)
    vmem = pl.BlockSpec(memory_space=pltpu.MemorySpace.VMEM)
    return pl.pallas_call(
        hybrid_kernel,
        out_shape=jax.ShapeDtypeStruct((B, OUT), jnp.float32),
        in_specs=[smem, smem, vmem, vmem, vmem, vmem, vmem],
        out_specs=vmem,
    )(wc2, bc1, patches, w1p, b1p, w2p, b2p)


def reference_forward(x, params):
    """Pure-JAX reference matching the PyTorch forward (eval mode)."""
    wc, bc, w1, b1, w2, b2 = params
    conv = lax.conv_general_dilated(x, wc, window_strides=(2, 2), padding="VALID",
                                    dimension_numbers=("NCHW", "OIHW", "NCHW"))
    conv = jnp.maximum(conv + bc.reshape(1, OC, 1, 1), 0.0)
    flat = conv.reshape(B, -1)
    h = jnp.maximum(flat @ w1.T + b1, 0.0)
    # Dropout(0.5) -> identity in eval mode; checkpoint is a no-op for forward.
    return h @ w2.T + b2


def init_params(key):
    # Deterministic synthetic init with PyTorch parameter shapes.
    ks = jax.random.split(key, 6)
    wc = jax.random.uniform(ks[0], (OC, 1, 2, 2), jnp.float32, -0.5, 0.5)
    bc = jax.random.uniform(ks[1], (OC,), jnp.float32, -0.5, 0.5)
    w1 = jax.random.uniform(ks[2], (HID, KC * P), jnp.float32, -0.03, 0.03)
    b1 = jax.random.uniform(ks[3], (HID,), jnp.float32, -0.03, 0.03)
    w2 = jax.random.uniform(ks[4], (OUT, HID), jnp.float32, -0.18, 0.18)
    b2 = jax.random.uniform(ks[5], (OUT,), jnp.float32, -0.18, 0.18)
    return wc, bc, w1, b1, w2, b2


if __name__ == "__main__":
    key = jax.random.PRNGKey(0)
    kx, kp = jax.random.split(key)
    x = jax.random.normal(kx, (B, 1, H, W), jnp.float32)
    params = init_params(kp)
    prepped = prepare_params(params)          # one-time weight layout prep

    out = hybrid_forward(x, prepped)
    out = jax.block_until_ready(out)

    ref = reference_forward(x, params)
    assert out.shape == (B, OUT)
    assert jnp.allclose(out, ref, atol=1e-4, rtol=1e-4), (out, ref)
    print("KERNEL_OK")
</pallas_src>

<mosaic_0001>
module attributes {stable_mosaic.version = 11 : i64} {
  func.func @hybrid_kernel(%arg0: memref<4x4xf32, #tpu.memory_space<smem>>, %arg1: memref<4xf32, #tpu.memory_space<smem>>, %arg2: memref<4x2x256xf32, #tpu.memory_space<vmem>>, %arg3: memref<1024x30xf32, #tpu.memory_space<vmem>>, %arg4: memref<1x30xf32, #tpu.memory_space<vmem>>, %arg5: memref<30x10xf32, #tpu.memory_space<vmem>>, %arg6: memref<1x10xf32, #tpu.memory_space<vmem>>, %arg7: memref<2x10xf32, #tpu.memory_space<vmem>>) attributes {dimension_semantics = [], scalar_prefetch = 0 : i64, scratch_operands = 0 : i64, tpu.core_type = #tpu.core_type<tc>} {
    %c0 = arith.constant 0 : index
    %c0_0 = arith.constant 0 : index
    %c0_1 = arith.constant 0 : index
    %0 = vector.load %arg2[%c0, %c0_0, %c0_1] : memref<4x2x256xf32, #tpu.memory_space<vmem>>, vector<4x2x256xf32>
    %c0_2 = arith.constant 0 : index
    %c0_3 = arith.constant 0 : index
    %1 = memref.load %arg0[%c0_2, %c0_3] : memref<4x4xf32, #tpu.memory_space<smem>>
    %2 = vector.extract_strided_slice %0 {offsets = [0, 0, 0], sizes = [1, 2, 256], strides = [1, 1, 1]} : vector<4x2x256xf32> to vector<1x2x256xf32>
    %3 = vector.shape_cast %2 : vector<1x2x256xf32> to vector<2x256xf32>
    %4 = vector.broadcast %1 : f32 to vector<2x256xf32>
    %5 = arith.mulf %4, %3 : vector<2x256xf32>
    %c0_4 = arith.constant 0 : index
    %c1 = arith.constant 1 : index
    %6 = memref.load %arg0[%c0_4, %c1] : memref<4x4xf32, #tpu.memory_space<smem>>
    %7 = vector.extract_strided_slice %0 {offsets = [1, 0, 0], sizes = [1, 2, 256], strides = [1, 1, 1]} : vector<4x2x256xf32> to vector<1x2x256xf32>
    %8 = vector.shape_cast %7 : vector<1x2x256xf32> to vector<2x256xf32>
    %9 = vector.broadcast %6 : f32 to vector<2x256xf32>
    %10 = arith.mulf %9, %8 : vector<2x256xf32>
    %11 = arith.addf %5, %10 : vector<2x256xf32>
    %c0_5 = arith.constant 0 : index
    %c2 = arith.constant 2 : index
    %12 = memref.load %arg0[%c0_5, %c2] : memref<4x4xf32, #tpu.memory_space<smem>>
    %13 = vector.extract_strided_slice %0 {offsets = [2, 0, 0], sizes = [1, 2, 256], strides = [1, 1, 1]} : vector<4x2x256xf32> to vector<1x2x256xf32>
    %14 = vector.shape_cast %13 : vector<1x2x256xf32> to vector<2x256xf32>
    %15 = vector.broadcast %12 : f32 to vector<2x256xf32>
    %16 = arith.mulf %15, %14 : vector<2x256xf32>
    %17 = arith.addf %11, %16 : vector<2x256xf32>
    %c0_6 = arith.constant 0 : index
    %c3 = arith.constant 3 : index
    %18 = memref.load %arg0[%c0_6, %c3] : memref<4x4xf32, #tpu.memory_space<smem>>
    %19 = vector.extract_strided_slice %0 {offsets = [3, 0, 0], sizes = [1, 2, 256], strides = [1, 1, 1]} : vector<4x2x256xf32> to vector<1x2x256xf32>
    %20 = vector.shape_cast %19 : vector<1x2x256xf32> to vector<2x256xf32>
    %21 = vector.broadcast %18 : f32 to vector<2x256xf32>
    %22 = arith.mulf %21, %20 : vector<2x256xf32>
    %23 = arith.addf %17, %22 : vector<2x256xf32>
    %c0_7 = arith.constant 0 : index
    %24 = memref.load %arg1[%c0_7] : memref<4xf32, #tpu.memory_space<smem>>
    %25 = vector.broadcast %24 : f32 to vector<2x256xf32>
    %26 = arith.addf %23, %25 : vector<2x256xf32>
    %cst = arith.constant 0.000000e+00 : f32
    %27 = vector.broadcast %cst : f32 to vector<2x256xf32>
    %28 = arith.maximumf %26, %27 : vector<2x256xf32>
    %c1_8 = arith.constant 1 : index
    %c0_9 = arith.constant 0 : index
    %29 = memref.load %arg0[%c1_8, %c0_9] : memref<4x4xf32, #tpu.memory_space<smem>>
    %30 = vector.extract_strided_slice %0 {offsets = [0, 0, 0], sizes = [1, 2, 256], strides = [1, 1, 1]} : vector<4x2x256xf32> to vector<1x2x256xf32>
    %31 = vector.shape_cast %30 : vector<1x2x256xf32> to vector<2x256xf32>
    %32 = vector.broadcast %29 : f32 to vector<2x256xf32>
    %33 = arith.mulf %32, %31 : vector<2x256xf32>
    %c1_10 = arith.constant 1 : index
    %c1_11 = arith.constant 1 : index
    %34 = memref.load %arg0[%c1_10, %c1_11] : memref<4x4xf32, #tpu.memory_space<smem>>
    %35 = vector.extract_strided_slice %0 {offsets = [1, 0, 0], sizes = [1, 2, 256], strides = [1, 1, 1]} : vector<4x2x256xf32> to vector<1x2x256xf32>
    %36 = vector.shape_cast %35 : vector<1x2x256xf32> to vector<2x256xf32>
    %37 = vector.broadcast %34 : f32 to vector<2x256xf32>
    %38 = arith.mulf %37, %36 : vector<2x256xf32>
    %39 = arith.addf %33, %38 : vector<2x256xf32>
    %c1_12 = arith.constant 1 : index
    %c2_13 = arith.constant 2 : index
    %40 = memref.load %arg0[%c1_12, %c2_13] : memref<4x4xf32, #tpu.memory_space<smem>>
    %41 = vector.extract_strided_slice %0 {offsets = [2, 0, 0], sizes = [1, 2, 256], strides = [1, 1, 1]} : vector<4x2x256xf32> to vector<1x2x256xf32>
    %42 = vector.shape_cast %41 : vector<1x2x256xf32> to vector<2x256xf32>
    %43 = vector.broadcast %40 : f32 to vector<2x256xf32>
    %44 = arith.mulf %43, %42 : vector<2x256xf32>
    %45 = arith.addf %39, %44 : vector<2x256xf32>
    %c1_14 = arith.constant 1 : index
    %c3_15 = arith.constant 3 : index
    %46 = memref.load %arg0[%c1_14, %c3_15] : memref<4x4xf32, #tpu.memory_space<smem>>
    %47 = vector.extract_strided_slice %0 {offsets = [3, 0, 0], sizes = [1, 2, 256], strides = [1, 1, 1]} : vector<4x2x256xf32> to vector<1x2x256xf32>
    %48 = vector.shape_cast %47 : vector<1x2x256xf32> to vector<2x256xf32>
    %49 = vector.broadcast %46 : f32 to vector<2x256xf32>
    %50 = arith.mulf %49, %48 : vector<2x256xf32>
    %51 = arith.addf %45, %50 : vector<2x256xf32>
    %c1_16 = arith.constant 1 : index
    %52 = memref.load %arg1[%c1_16] : memref<4xf32, #tpu.memory_space<smem>>
    %53 = vector.broadcast %52 : f32 to vector<2x256xf32>
    %54 = arith.addf %51, %53 : vector<2x256xf32>
    %cst_17 = arith.constant 0.000000e+00 : f32
    %55 = vector.broadcast %cst_17 : f32 to vector<2x256xf32>
    %56 = arith.maximumf %54, %55 : vector<2x256xf32>
    %c2_18 = arith.constant 2 : index
    %c0_19 = arith.constant 0 : index
    %57 = memref.load %arg0[%c2_18, %c0_19] : memref<4x4xf32, #tpu.memory_space<smem>>
    %58 = vector.extract_strided_slice %0 {offsets = [0, 0, 0], sizes = [1, 2, 256], strides = [1, 1, 1]} : vector<4x2x256xf32> to vector<1x2x256xf32>
    %59 = vector.shape_cast %58 : vector<1x2x256xf32> to vector<2x256xf32>
    %60 = vector.broadcast %57 : f32 to vector<2x256xf32>
    %61 = arith.mulf %60, %59 : vector<2x256xf32>
    %c2_20 = arith.constant 2 : index
    %c1_21 = arith.constant 1 : index
    %62 = memref.load %arg0[%c2_20, %c1_21] : memref<4x4xf32, #tpu.memory_space<smem>>
    %63 = vector.extract_strided_slice %0 {offsets = [1, 0, 0], sizes = [1, 2, 256], strides = [1, 1, 1]} : vector<4x2x256xf32> to vector<1x2x256xf32>
    %64 = vector.shape_cast %63 : vector<1x2x256xf32> to vector<2x256xf32>
    %65 = vector.broadcast %62 : f32 to vector<2x256xf32>
    %66 = arith.mulf %65, %64 : vector<2x256xf32>
    %67 = arith.addf %61, %66 : vector<2x256xf32>
    %c2_22 = arith.constant 2 : index
    %c2_23 = arith.constant 2 : index
    %68 = memref.load %arg0[%c2_22, %c2_23] : memref<4x4xf32, #tpu.memory_space<smem>>
    %69 = vector.extract_strided_slice %0 {offsets = [2, 0, 0], sizes = [1, 2, 256], strides = [1, 1, 1]} : vector<4x2x256xf32> to vector<1x2x256xf32>
    %70 = vector.shape_cast %69 : vector<1x2x256xf32> to vector<2x256xf32>
    %71 = vector.broadcast %68 : f32 to vector<2x256xf32>
    %72 = arith.mulf %71, %70 : vector<2x256xf32>
    %73 = arith.addf %67, %72 : vector<2x256xf32>
    %c2_24 = arith.constant 2 : index
    %c3_25 = arith.constant 3 : index
    %74 = memref.load %arg0[%c2_24, %c3_25] : memref<4x4xf32, #tpu.memory_space<smem>>
    %75 = vector.extract_strided_slice %0 {offsets = [3, 0, 0], sizes = [1, 2, 256], strides = [1, 1, 1]} : vector<4x2x256xf32> to vector<1x2x256xf32>
    %76 = vector.shape_cast %75 : vector<1x2x256xf32> to vector<2x256xf32>
    %77 = vector.broadcast %74 : f32 to vector<2x256xf32>
    %78 = arith.mulf %77, %76 : vector<2x256xf32>
    %79 = arith.addf %73, %78 : vector<2x256xf32>
    %c2_26 = arith.constant 2 : index
    %80 = memref.load %arg1[%c2_26] : memref<4xf32, #tpu.memory_space<smem>>
    %81 = vector.broadcast %80 : f32 to vector<2x256xf32>
    %82 = arith.addf %79, %81 : vector<2x256xf32>
    %cst_27 = arith.constant 0.000000e+00 : f32
    %83 = vector.broadcast %cst_27 : f32 to vector<2x256xf32>
    %84 = arith.maximumf %82, %83 : vector<2x256xf32>
    %c3_28 = arith.constant 3 : index
    %c0_29 = arith.constant 0 : index
    %85 = memref.load %arg0[%c3_28, %c0_29] : memref<4x4xf32, #tpu.memory_space<smem>>
    %86 = vector.extract_strided_slice %0 {offsets = [0, 0, 0], sizes = [1, 2, 256], strides = [1, 1, 1]} : vector<4x2x256xf32> to vector<1x2x256xf32>
    %87 = vector.shape_cast %86 : vector<1x2x256xf32> to vector<2x256xf32>
    %88 = vector.broadcast %85 : f32 to vector<2x256xf32>
    %89 = arith.mulf %88, %87 : vector<2x256xf32>
    %c3_30 = arith.constant 3 : index
    %c1_31 = arith.constant 1 : index
    %90 = memref.load %arg0[%c3_30, %c1_31] : memref<4x4xf32, #tpu.memory_space<smem>>
    %91 = vector.extract_strided_slice %0 {offsets = [1, 0, 0], sizes = [1, 2, 256], strides = [1, 1, 1]} : vector<4x2x256xf32> to vector<1x2x256xf32>
    %92 = vector.shape_cast %91 : vector<1x2x256xf32> to vector<2x256xf32>
    %93 = vector.broadcast %90 : f32 to vector<2x256xf32>
    %94 = arith.mulf %93, %92 : vector<2x256xf32>
    %95 = arith.addf %89, %94 : vector<2x256xf32>
    %c3_32 = arith.constant 3 : index
    %c2_33 = arith.constant 2 : index
    %96 = memref.load %arg0[%c3_32, %c2_33] : memref<4x4xf32, #tpu.memory_space<smem>>
    %97 = vector.extract_strided_slice %0 {offsets = [2, 0, 0], sizes = [1, 2, 256], strides = [1, 1, 1]} : vector<4x2x256xf32> to vector<1x2x256xf32>
    %98 = vector.shape_cast %97 : vector<1x2x256xf32> to vector<2x256xf32>
    %99 = vector.broadcast %96 : f32 to vector<2x256xf32>
    %100 = arith.mulf %99, %98 : vector<2x256xf32>
    %101 = arith.addf %95, %100 : vector<2x256xf32>
    %c3_34 = arith.constant 3 : index
    %c3_35 = arith.constant 3 : index
    %102 = memref.load %arg0[%c3_34, %c3_35] : memref<4x4xf32, #tpu.memory_space<smem>>
    %103 = vector.extract_strided_slice %0 {offsets = [3, 0, 0], sizes = [1, 2, 256], strides = [1, 1, 1]} : vector<4x2x256xf32> to vector<1x2x256xf32>
    %104 = vector.shape_cast %103 : vector<1x2x256xf32> to vector<2x256xf32>
    %105 = vector.broadcast %102 : f32 to vector<2x256xf32>
    %106 = arith.mulf %105, %104 : vector<2x256xf32>
    %107 = arith.addf %101, %106 : vector<2x256xf32>
    %c3_36 = arith.constant 3 : index
    %108 = memref.load %arg1[%c3_36] : memref<4xf32, #tpu.memory_space<smem>>
    %109 = vector.broadcast %108 : f32 to vector<2x256xf32>
    %110 = arith.addf %107, %109 : vector<2x256xf32>
    %cst_37 = arith.constant 0.000000e+00 : f32
    %111 = vector.broadcast %cst_37 : f32 to vector<2x256xf32>
    %112 = arith.maximumf %110, %111 : vector<2x256xf32>
    %113 = tpu.concatenate %28, %56, %84, %112 in 1 : vector<2x256xf32>, vector<2x256xf32>, vector<2x256xf32>, vector<2x256xf32> -> vector<2x1024xf32>
    %c0_38 = arith.constant 0 : index
    %c0_39 = arith.constant 0 : index
    %114 = vector.load %arg3[%c0_38, %c0_39] : memref<1024x30xf32, #tpu.memory_space<vmem>>, vector<1024x30xf32>
    %cst_40 = arith.constant dense<0.000000e+00> : vector<2x30xf32>
    %115 = tpu.matmul %113, %114, %cst_40 {dimension_numbers = #tpu.dot_dimension_numbers<[1], [0], [0], [1], [0, 0, 1, 1], [], []>} : vector<2x1024xf32>, vector<1024x30xf32>, vector<2x30xf32> -> vector<2x30xf32>
    %c0_41 = arith.constant 0 : index
    %c0_42 = arith.constant 0 : index
    %116 = vector.load %arg4[%c0_41, %c0_42] : memref<1x30xf32, #tpu.memory_space<vmem>>, vector<1x30xf32>
    %117 = vector.broadcast %116 : vector<1x30xf32> to vector<2x30xf32>
    %118 = arith.addf %115, %117 : vector<2x30xf32>
    %cst_43 = arith.constant 0.000000e+00 : f32
    %119 = vector.broadcast %cst_43 : f32 to vector<2x30xf32>
    %120 = arith.maximumf %118, %119 : vector<2x30xf32>
    %c0_44 = arith.constant 0 : index
    %c0_45 = arith.constant 0 : index
    %121 = vector.load %arg5[%c0_44, %c0_45] : memref<30x10xf32, #tpu.memory_space<vmem>>, vector<30x10xf32>
    %cst_46 = arith.constant dense<0.000000e+00> : vector<2x10xf32>
    %122 = tpu.matmul %120, %121, %cst_46 {dimension_numbers = #tpu.dot_dimension_numbers<[1], [0], [0], [1], [0, 0, 1, 1], [], []>} : vector<2x30xf32>, vector<30x10xf32>, vector<2x10xf32> -> vector<2x10xf32>
    %c0_47 = arith.constant 0 : index
    %c0_48 = arith.constant 0 : index
    %123 = vector.load %arg6[%c0_47, %c0_48] : memref<1x10xf32, #tpu.memory_space<vmem>>, vector<1x10xf32>
    %124 = vector.broadcast %123 : vector<1x10xf32> to vector<2x10xf32>
    %125 = arith.addf %122, %124 : vector<2x10xf32>
    %c0_49 = arith.constant 0 : index
    %c0_50 = arith.constant 0 : index
    %126 = vector.load %arg7[%c0_49, %c0_50] : memref<2x10xf32, #tpu.memory_space<vmem>>, vector<2x10xf32>
    tpu.vector_store %arg7[%c0_49, %c0_50], %125 {strides = array<i32>} : memref<2x10xf32, #tpu.memory_space<vmem>>, vector<2x10xf32>,
    return
  }
}

</mosaic_0001>

<llo_original>
// kernel: squeeze.1
$region0: #{squeeze.1}
  %s0 = inlined_call_operand.vmem [shape: f32[2,1,28,28], index: 0, kind: input, shape index: {}]
  %s1 = inlined_call_operand.vmem [shape: f32[2,14,2,14,2], index: 1, kind: output, shape index: {}]
  $region1: #{squeeze.1} parent=0
    #allocation0 [shape = 'u8[114688]{0}', space=vmem, size = 0x1c000, scoped, tag = 'scoped mem for input reshape']
    %s3 = sshllo.u32 0, 2
    %s4 = smul.addr 2, 27
    %s5 = scalar_lea.vmem %s0, %s4
    %v6 = vld [vmem:[%s5] sm:%s3]
    %s7 = scalar_lea.vmem [#allocation0], 216
    %8 = vst [vmem:[%s7] sm:%s3] %v6
    %s9 = smul.addr 2, 26
    %s10 = scalar_lea.vmem %s0, %s9
    %v11 = vld [vmem:[%s10] sm:%s3]
    %s12 = scalar_lea.vmem [#allocation0], 208
    %13 = vst [vmem:[%s12] sm:%s3] %v11
    %s14 = smul.addr 2, 25
    %s15 = scalar_lea.vmem %s0, %s14
    %v16 = vld [vmem:[%s15] sm:%s3]
    %s17 = scalar_lea.vmem [#allocation0], 200
    %18 = vst [vmem:[%s17] sm:%s3] %v16
    %s19 = smul.addr 2, 24
    %s20 = scalar_lea.vmem %s0, %s19
    %v21 = vld [vmem:[%s20] sm:%s3]
    %s22 = scalar_lea.vmem [#allocation0], 192
    %23 = vst [vmem:[%s22] sm:%s3] %v21
    %s24 = smul.addr 2, 23
    %s25 = scalar_lea.vmem %s0, %s24
    %v26 = vld [vmem:[%s25] sm:%s3]
    %s27 = scalar_lea.vmem [#allocation0], 184
    %28 = vst [vmem:[%s27] sm:%s3] %v26
    %s29 = smul.addr 2, 22
    %s30 = scalar_lea.vmem %s0, %s29
    %v31 = vld [vmem:[%s30] sm:%s3]
    %s32 = scalar_lea.vmem [#allocation0], 176
    %33 = vst [vmem:[%s32] sm:%s3] %v31
    %s34 = smul.addr 2, 21
    %s35 = scalar_lea.vmem %s0, %s34
    %v36 = vld [vmem:[%s35] sm:%s3]
    %s37 = scalar_lea.vmem [#allocation0], 168
    %38 = vst [vmem:[%s37] sm:%s3] %v36
    %s39 = smul.addr 2, 20
    %s40 = scalar_lea.vmem %s0, %s39
    %v41 = vld [vmem:[%s40] sm:%s3]
    %s42 = scalar_lea.vmem [#allocation0], 160
    %43 = vst [vmem:[%s42] sm:%s3] %v41
    %s44 = smul.addr 2, 19
    %s45 = scalar_lea.vmem %s0, %s44
    %v46 = vld [vmem:[%s45] sm:%s3]
    %s47 = scalar_lea.vmem [#allocation0], 152
    %48 = vst [vmem:[%s47] sm:%s3] %v46
    %s49 = smul.addr 2, 18
    %s50 = scalar_lea.vmem %s0, %s49
    %v51 = vld [vmem:[%s50] sm:%s3]
    %s52 = scalar_lea.vmem [#allocation0], 144
    %53 = vst [vmem:[%s52] sm:%s3] %v51
    %s54 = smul.addr 2, 17
    %s55 = scalar_lea.vmem %s0, %s54
    %v56 = vld [vmem:[%s55] sm:%s3]
    %s57 = scalar_lea.vmem [#allocation0], 136
    %58 = vst [vmem:[%s57] sm:%s3] %v56
    %s59 = smul.addr 2, 16
    %s60 = scalar_lea.vmem %s0, %s59
    %v61 = vld [vmem:[%s60] sm:%s3]
    %s62 = scalar_lea.vmem [#allocation0], 128
    %63 = vst [vmem:[%s62] sm:%s3] %v61
    %s64 = smul.addr 2, 15
    %s65 = scalar_lea.vmem %s0, %s64
    %v66 = vld [vmem:[%s65] sm:%s3]
    %s67 = scalar_lea.vmem [#allocation0], 120
    %68 = vst [vmem:[%s67] sm:%s3] %v66
    %s69 = smul.addr 2, 14
    %s70 = scalar_lea.vmem %s0, %s69
    %v71 = vld [vmem:[%s70] sm:%s3]
    %s72 = scalar_lea.vmem [#allocation0], 112
    %73 = vst [vmem:[%s72] sm:%s3] %v71
    %s74 = smul.addr 2, 13
    %s75 = scalar_lea.vmem %s0, %s74
    %v76 = vld [vmem:[%s75] sm:%s3]
    %s77 = scalar_lea.vmem [#allocation0], 104
    %78 = vst [vmem:[%s77] sm:%s3] %v76
    %s79 = smul.addr 2, 12
    %s80 = scalar_lea.vmem %s0, %s79
    %v81 = vld [vmem:[%s80] sm:%s3]
    %s82 = scalar_lea.vmem [#allocation0], 96
    %83 = vst [vmem:[%s82] sm:%s3] %v81
    %s84 = smul.addr 2, 11
    %s85 = scalar_lea.vmem %s0, %s84
    %v86 = vld [vmem:[%s85] sm:%s3]
    %s87 = scalar_lea.vmem [#allocation0], 88
    %88 = vst [vmem:[%s87] sm:%s3] %v86
    %s89 = smul.addr 2, 10
    %s90 = scalar_lea.vmem %s0, %s89
    %v91 = vld [vmem:[%s90] sm:%s3]
    %s92 = scalar_lea.vmem [#allocation0], 80
    %93 = vst [vmem:[%s92] sm:%s3] %v91
    %s94 = smul.addr 2, 9
    %s95 = scalar_lea.vmem %s0, %s94
    %v96 = vld [vmem:[%s95] sm:%s3]
    %s97 = scalar_lea.vmem [#allocation0], 72
    %98 = vst [vmem:[%s97] sm:%s3] %v96
    %s99 = smul.addr 2, 8
    %s100 = scalar_lea.vmem %s0, %s99
    %v101 = vld [vmem:[%s100] sm:%s3]
    %s102 = scalar_lea.vmem [#allocation0], 64
    %103 = vst [vmem:[%s102] sm:%s3] %v101
    %s104 = smul.addr 2, 7
    %s105 = scalar_lea.vmem %s0, %s104
    %v106 = vld [vmem:[%s105] sm:%s3]
    %s107 = scalar_lea.vmem [#allocation0], 56
    %108 = vst [vmem:[%s107] sm:%s3] %v106
    %s109 = smul.addr 2, 6
    %s110 = scalar_lea.vmem %s0, %s109
    %v111 = vld [vmem:[%s110] sm:%s3]
    %s112 = scalar_lea.vmem [#allocation0], 48
    %113 = vst [vmem:[%s112] sm:%s3] %v111
    %s114 = smul.addr 2, 5
    %s115 = scalar_lea.vmem %s0, %s114
    %v116 = vld [vmem:[%s115] sm:%s3]
    %s117 = scalar_lea.vmem [#allocation0], 40
    %118 = vst [vmem:[%s117] sm:%s3] %v116
    %s119 = smul.addr 2, 4
    %s120 = scalar_lea.vmem %s0, %s119
    %v121 = vld [vmem:[%s120] sm:%s3]
    %s122 = scalar_lea.vmem [#allocation0], 32
    %123 = vst [vmem:[%s122] sm:%s3] %v121
    %s124 = smul.addr 2, 3
    %s125 = scalar_lea.vmem %s0, %s124
    %v126 = vld [vmem:[%s125] sm:%s3]
    %s127 = scalar_lea.vmem [#allocation0], 24
    %128 = vst [vmem:[%s127] sm:%s3] %v126
    %s129 = smul.addr 2, 2
    %s130 = scalar_lea.vmem %s0, %s129
    %v131 = vld [vmem:[%s130] sm:%s3]
    %s132 = scalar_lea.vmem [#allocation0], 16
    %133 = vst [vmem:[%s132] sm:%s3] %v131
    %s134 = scalar_lea.vmem %s0, 2
    %v135 = vld [vmem:[%s134] sm:%s3]
    %s136 = scalar_lea.vmem [#allocation0], 8
    %137 = vst [vmem:[%s136] sm:%s3] %v135
    %v138 = vld [vmem:[%s0] sm:%s3]
    %139 = vst [vmem:[#allocation0] sm:%s3] %v138
    %v140 = vld [vmem:[#allocation0] sm:$0x3]
    %vm141 = vcmask 15360
    %142 = vst.msk [vmem:[%s1] ss:$16 sm:$0x3] %vm141, %v140
    %s143 = scalar_lea.vmem [#allocation0], 8
    %v144 = vld [vmem:[%s143] sm:$0x3]
    %vm145 = vcmask 15360
    %s146 = scalar_lea.vmem %s1, 32
    %147 = vst.msk [vmem:[%s146] ss:$16 sm:$0x3] %vm145, %v144
    %s148 = scalar_lea.vmem [#allocation0], 16
    %v149 = vld [vmem:[%s148] sm:$0x3]
    %vm150 = vcmask 15360
    %s151 = scalar_lea.vmem %s1, 64
    %152 = vst.msk [vmem:[%s151] ss:$16 sm:$0x3] %vm150, %v149
    %s153 = scalar_lea.vmem [#allocation0], 24
    %v154 = vld [vmem:[%s153] sm:$0x3]
    %vm155 = vcmask 15360
    %s156 = scalar_lea.vmem %s1, 96
    %157 = vst.msk [vmem:[%s156] ss:$16 sm:$0x3] %vm155, %v154
    %s158 = scalar_lea.vmem [#allocation0], 32
    %v159 = vld [vmem:[%s158] sm:$0x3]
    %vm160 = vcmask 15360
    %s161 = scalar_lea.vmem %s1, 128
    %162 = vst.msk [vmem:[%s161] ss:$16 sm:$0x3] %vm160, %v159
    %s163 = scalar_lea.vmem [#allocation0], 40
    %v164 = vld [vmem:[%s163] sm:$0x3]
    %vm165 = vcmask 15360
    %s166 = scalar_lea.vmem %s1, 160
    %167 = vst.msk [vmem:[%s166] ss:$16 sm:$0x3] %vm165, %v164
    %s168 = scalar_lea.vmem [#allocation0], 48
    %v169 = vld [vmem:[%s168] sm:$0x3]
    %vm170 = vcmask 15360
    %s171 = scalar_lea.vmem %s1, 192
    %172 = vst.msk [vmem:[%s171] ss:$16 sm:$0x3] %vm170, %v169
    %s173 = scalar_lea.vmem [#allocation0], 56
    %v174 = vld [vmem:[%s173] sm:$0x3]
    %vm175 = vcmask 15360
    %s176 = scalar_lea.vmem %s1, 224
    %177 = vst.msk [vmem:[%s176] ss:$16 sm:$0x3] %vm175, %v174
    %s178 = scalar_lea.vmem [#allocation0], 64
    %v179 = vld [vmem:[%s178] sm:$0x3]
    %vm180 = vcmask 15360
    %s181 = scalar_lea.vmem %s1, 256
    %182 = vst.msk [vmem:[%s181] ss:$16 sm:$0x3] %vm180, %v179
    %s183 = scalar_lea.vmem [#allocation0], 72
    %v184 = vld [vmem:[%s183] sm:$0x3]
    %vm185 = vcmask 15360
    %s186 = scalar_lea.vmem %s1, 288
    %187 = vst.msk [vmem:[%s186] ss:$16 sm:$0x3] %vm185, %v184
    %s188 = scalar_lea.vmem [#allocation0], 80
    %v189 = vld [vmem:[%s188] sm:$0x3]
    %vm190 = vcmask 15360
    %s191 = scalar_lea.vmem %s1, 320
    %192 = vst.msk [vmem:[%s191] ss:$16 sm:$0x3] %vm190, %v189
    %s193 = scalar_lea.vmem [#allocation0], 88
    %v194 = vld [vmem:[%s193] sm:$0x3]
    %vm195 = vcmask 15360
    %s196 = scalar_lea.vmem %s1, 352
    %197 = vst.msk [vmem:[%s196] ss:$16 sm:$0x3] %vm195, %v194
    %s198 = scalar_lea.vmem [#allocation0], 96
    %v199 = vld [vmem:[%s198] sm:$0x3]
    %vm200 = vcmask 15360
    %s201 = scalar_lea.vmem %s1, 384
    %202 = vst.msk [vmem:[%s201] ss:$16 sm:$0x3] %vm200, %v199
    %s203 = scalar_lea.vmem [#allocation0], 104
    %v204 = vld [vmem:[%s203] sm:$0x3]
    %vm205 = vcmask 15360
    %s206 = scalar_lea.vmem %s1, 416
    %207 = vst.msk [vmem:[%s206] ss:$16 sm:$0x3] %vm205, %v204
    %s208 = scalar_lea.vmem [#allocation0], 112
    %v209 = vld [vmem:[%s208] sm:$0x3]
    %vm210 = vcmask 15360
    %s211 = scalar_lea.vmem %s1, 448
    %212 = vst.msk [vmem:[%s211] ss:$16 sm:$0x3] %vm210, %v209
    %s213 = scalar_lea.vmem [#allocation0], 120
    %v214 = vld [vmem:[%s213] sm:$0x3]
    %vm215 = vcmask 15360
    %s216 = scalar_lea.vmem %s1, 480
    %217 = vst.msk [vmem:[%s216] ss:$16 sm:$0x3] %vm215, %v214
    %s218 = scalar_lea.vmem [#allocation0], 128
    %v219 = vld [vmem:[%s218] sm:$0x3]
    %vm220 = vcmask 15360
    %s221 = scalar_lea.vmem %s1, 512
    %222 = vst.msk [vmem:[%s221] ss:$16 sm:$0x3] %vm220, %v219
    %s223 = scalar_lea.vmem [#allocation0], 136
    %v224 = vld [vmem:[%s223] sm:$0x3]
    %vm225 = vcmask 15360
    %s226 = scalar_lea.vmem %s1, 544
    %227 = vst.msk [vmem:[%s226] ss:$16 sm:$0x3] %vm225, %v224
    %s228 = scalar_lea.vmem [#allocation0], 144
    %v229 = vld [vmem:[%s228] sm:$0x3]
    %vm230 = vcmask 15360
    %s231 = scalar_lea.vmem %s1, 576
    %232 = vst.msk [vmem:[%s231] ss:$16 sm:$0x3] %vm230, %v229
    %s233 = scalar_lea.vmem [#allocation0], 152
    %v234 = vld [vmem:[%s233] sm:$0x3]
    %vm235 = vcmask 15360
    %s236 = scalar_lea.vmem %s1, 608
    %237 = vst.msk [vmem:[%s236] ss:$16 sm:$0x3] %vm235, %v234
    %s238 = scalar_lea.vmem [#allocation0], 160
    %v239 = vld [vmem:[%s238] sm:$0x3]
    %vm240 = vcmask 15360
    %s241 = scalar_lea.vmem %s1, 640
    %242 = vst.msk [vmem:[%s241] ss:$16 sm:$0x3] %vm240, %v239
    %s243 = scalar_lea.vmem [#allocation0], 168
    %v244 = vld [vmem:[%s243] sm:$0x3]
    %vm245 = vcmask 15360
    %s246 = scalar_lea.vmem %s1, 672
    %247 = vst.msk [vmem:[%s246] ss:$16 sm:$0x3] %vm245, %v244
    %s248 = scalar_lea.vmem [#allocation0], 176
    %v249 = vld [vmem:[%s248] sm:$0x3]
    %vm250 = vcmask 15360
    %s251 = scalar_lea.vmem %s1, 704
    %252 = vst.msk [vmem:[%s251] ss:$16 sm:$0x3] %vm250, %v249
    %s253 = scalar_lea.vmem [#allocation0], 184
    %v254 = vld [vmem:[%s253] sm:$0x3]
    %vm255 = vcmask 15360
    %s256 = scalar_lea.vmem %s1, 736
    %257 = vst.msk [vmem:[%s256] ss:$16 sm:$0x3] %vm255, %v254
    %s258 = scalar_lea.vmem [#allocation0], 192
    %v259 = vld [vmem:[%s258] sm:$0x3]
    %vm260 = vcmask 15360
    %s261 = scalar_lea.vmem %s1, 768
    %262 = vst.msk [vmem:[%s261] ss:$16 sm:$0x3] %vm260, %v259
    %s263 = scalar_lea.vmem [#allocation0], 200
    %v264 = vld [vmem:[%s263] sm:$0x3]
    %vm265 = vcmask 15360
    %s266 = scalar_lea.vmem %s1, 800
    %267 = vst.msk [vmem:[%s266] ss:$16 sm:$0x3] %vm265, %v264
    %s268 = scalar_lea.vmem [#allocation0], 208
    %v269 = vld [vmem:[%s268] sm:$0x3]
    %vm270 = vcmask 15360
    %s271 = scalar_lea.vmem %s1, 832
    %272 = vst.msk [vmem:[%s271] ss:$16 sm:$0x3] %vm270, %v269
    %s273 = scalar_lea.vmem [#allocation0], 216
    %v274 = vld [vmem:[%s273] sm:$0x3]
    %vm275 = vcmask 15360
    %s276 = scalar_lea.vmem %s1, 864
    %277 = vst.msk [vmem:[%s276] ss:$16 sm:$0x3] %vm275, %v274
    %v278 = vld.sshfl [vmem:[#allocation0] sm:$0xff pattern:$0x99999810]
    %s279 = scalar_lea.vmem [#allocation0], 16
    %v280 = vld.sshfl [vmem:[%s279] sm:$0xff pattern:$0x98100000]
    %vm281 = vcmask 1047556
    %v282 = vsel %vm281, %v280, %v278
    %283 = vrot.lane.b32.xlu0 %v282, 126
    %v284 = vpop.permute.xlu0 %283
    %vm285 = vcmask 15360
    %s286 = scalar_lea.vmem %s1, 1
    %287 = vst.msk [vmem:[%s286] ss:$16 sm:$0x3] %vm285, %v284
    %s288 = scalar_lea.vmem %s1, 1
    %289 = vst.msk [vmem:[%s288] ss:$16 sm:$0xc] %vm285, %v284
    %s290 = scalar_lea.vmem %s1, 1
    %291 = vst.msk [vmem:[%s290] ss:$16 sm:$0x30] %vm285, %v284
    %s292 = scalar_lea.vmem %s1, 1
    %293 = vst.msk [vmem:[%s292] ss:$16 sm:$0xc0] %vm285, %v284
    %s294 = scalar_lea.vmem [#allocation0], 32
    %v295 = vld.sshfl [vmem:[%s294] sm:$0xff pattern:$0x99999810]
    %s296 = scalar_lea.vmem [#allocation0], 48
    %v297 = vld.sshfl [vmem:[%s296] sm:$0xff pattern:$0x98100000]
    %vm298 = vcmask 1047556
    %v299 = vsel %vm298, %v297, %v295
    %300 = vrot.lane.b32.xlu0 %v299, 126
    %v301 = vpop.permute.xlu0 %300
    %vm302 = vcmask 15360
    %s303 = scalar_lea.vmem %s1, 129
    %304 = vst.msk [vmem:[%s303] ss:$16 sm:$0x3] %vm302, %v301
    %s305 = scalar_lea.vmem %s1, 129
    %306 = vst.msk [vmem:[%s305] ss:$16 sm:$0xc] %vm302, %v301
    %s307 = scalar_lea.vmem %s1, 129
    %308 = vst.msk [vmem:[%s307] ss:$16 sm:$0x30] %vm302, %v301
    %s309 = scalar_lea.vmem %s1, 129
    %310 = vst.msk [vmem:[%s309] ss:$16 sm:$0xc0] %vm302, %v301
    %s311 = scalar_lea.vmem [#allocation0], 64
    %v312 = vld.sshfl [vmem:[%s311] sm:$0xff pattern:$0x99999810]
    %s313 = scalar_lea.vmem [#allocation0], 80
    %v314 = vld.sshfl [vmem:[%s313] sm:$0xff pattern:$0x98100000]
    %vm315 = vcmask 1047556
    %v316 = vsel %vm315, %v314, %v312
    %317 = vrot.lane.b32.xlu0 %v316, 126
    %v318 = vpop.permute.xlu0 %317
    %vm319 = vcmask 15360
    %s320 = scalar_lea.vmem %s1, 257
    %321 = vst.msk [vmem:[%s320] ss:$16 sm:$0x3] %vm319, %v318
    %s322 = scalar_lea.vmem %s1, 257
    %323 = vst.msk [vmem:[%s322] ss:$16 sm:$0xc] %vm319, %v318
    %s324 = scalar_lea.vmem %s1, 257
    %325 = vst.msk [vmem:[%s324] ss:$16 sm:$0x30] %vm319, %v318
    %s326 = scalar_lea.vmem %s1, 257
    %327 = vst.msk [vmem:[%s326] ss:$16 sm:$0xc0] %vm319, %v318
    %s328 = scalar_lea.vmem [#allocation0], 96
    %v329 = vld.sshfl [vmem:[%s328] sm:$0xff pattern:$0x99999810]
    %s330 = scalar_lea.vmem [#allocation0], 112
    %v331 = vld.sshfl [vmem:[%s330] sm:$0xff pattern:$0x98100000]
    %vm332 = vcmask 1047556
    %v333 = vsel %vm332, %v331, %v329
    %334 = vrot.lane.b32.xlu0 %v333, 126
    %v335 = vpop.permute.xlu0 %334
    %vm336 = vcmask 15360
    %s337 = scalar_lea.vmem %s1, 385
    %338 = vst.msk [vmem:[%s337] ss:$16 sm:$0x3] %vm336, %v335
    %s339 = scalar_lea.vmem %s1, 385
    %340 = vst.msk [vmem:[%s339] ss:$16 sm:$0xc] %vm336, %v335
    %s341 = scalar_lea.vmem %s1, 385
    %342 = vst.msk [vmem:[%s341] ss:$16 sm:$0x30] %vm336, %v335
    %s343 = scalar_lea.vmem %s1, 385
    %344 = vst.msk [vmem:[%s343] ss:$16 sm:$0xc0] %vm336, %v335
    %s345 = scalar_lea.vmem [#allocation0], 128
    %v346 = vld.sshfl [vmem:[%s345] sm:$0xff pattern:$0x99999810]
    %s347 = scalar_lea.vmem [#allocation0], 144
    %v348 = vld.sshfl [vmem:[%s347] sm:$0xff pattern:$0x98100000]
    %vm349 = vcmask 1047556
    %v350 = vsel %vm349, %v348, %v346
    %351 = vrot.lane.b32.xlu0 %v350, 126
    %v352 = vpop.permute.xlu0 %351
    %vm353 = vcmask 15360
    %s354 = scalar_lea.vmem %s1, 513
    %355 = vst.msk [vmem:[%s354] ss:$16 sm:$0x3] %vm353, %v352
    %s356 = scalar_lea.vmem %s1, 513
    %357 = vst.msk [vmem:[%s356] ss:$16 sm:$0xc] %vm353, %v352
    %s358 = scalar_lea.vmem %s1, 513
    %359 = vst.msk [vmem:[%s358] ss:$16 sm:$0x30] %vm353, %v352
    %s360 = scalar_lea.vmem %s1, 513
    %361 = vst.msk [vmem:[%s360] ss:$16 sm:$0xc0] %vm353, %v352
    %s362 = scalar_lea.vmem [#allocation0], 160
    %v363 = vld.sshfl [vmem:[%s362] sm:$0xff pattern:$0x99999810]
    %s364 = scalar_lea.vmem [#allocation0], 176
    %v365 = vld.sshfl [vmem:[%s364] sm:$0xff pattern:$0x98100000]
    %vm366 = vcmask 1047556
    %v367 = vsel %vm366, %v365, %v363
    %368 = vrot.lane.b32.xlu0 %v367, 126
    %v369 = vpop.permute.xlu0 %368
    %vm370 = vcmask 15360
    %s371 = scalar_lea.vmem %s1, 641
    %372 = vst.msk [vmem:[%s371] ss:$16 sm:$0x3] %vm370, %v369
    %s373 = scalar_lea.vmem %s1, 641
    %374 = vst.msk [vmem:[%s373] ss:$16 sm:$0xc] %vm370, %v369
    %s375 = scalar_lea.vmem %s1, 641
    %376 = vst.msk [vmem:[%s375] ss:$16 sm:$0x30] %vm370, %v369
    %s377 = scalar_lea.vmem %s1, 641
    %378 = vst.msk [vmem:[%s377] ss:$16 sm:$0xc0] %vm370, %v369
    %s379 = scalar_lea.vmem [#allocation0], 192
    %v380 = vld.sshfl [vmem:[%s379] sm:$0xff pattern:$0x99999810]
    %s381 = scalar_lea.vmem [#allocation0], 208
    %v382 = vld.sshfl [vmem:[%s381] sm:$0xff pattern:$0x98100000]
    %vm383 = vcmask 1047556
    %v384 = vsel %vm383, %v382, %v380
    %385 = vrot.lane.b32.xlu0 %v384, 126
    %v386 = vpop.permute.xlu0 %385
    %vm387 = vcmask 15360
    %s388 = scalar_lea.vmem %s1, 769
    %389 = vst.msk [vmem:[%s388] ss:$16 sm:$0x3] %vm387, %v386
    %s390 = scalar_lea.vmem %s1, 769
    %391 = vst.msk [vmem:[%s390] ss:$16 sm:$0xc] %vm387, %v386
    %s392 = scalar_lea.vmem %s1, 769
    %393 = vst.msk [vmem:[%s392] ss:$16 sm:$0x30] %vm387, %v386
    %s394 = scalar_lea.vmem %s1, 769
    %395 = vst.msk [vmem:[%s394] ss:$16 sm:$0xc0] %vm387, %v386
    %v396 = vld.sshfl [vmem:[#allocation0] sm:$0xff pattern:$0x99999810]
    %s397 = scalar_lea.vmem [#allocation0], 16
    %v398 = vld.sshfl [vmem:[%s397] sm:$0xff pattern:$0x98100000]
    %vm399 = vcmask 1047556
    %v400 = vsel %vm399, %v398, %v396
    %401 = vrot.lane.b32.xlu0 %v400, 124
    %v402 = vpop.permute.xlu0 %401
    %vm403 = vcmask 15360
    %s404 = scalar_lea.vmem %s1, 2
    %405 = vst.msk [vmem:[%s404] ss:$16 sm:$0x3] %vm403, %v402
    %s406 = scalar_lea.vmem %s1, 2
    %407 = vst.msk [vmem:[%s406] ss:$16 sm:$0xc] %vm403, %v402
    %s408 = scalar_lea.vmem %s1, 2
    %409 = vst.msk [vmem:[%s408] ss:$16 sm:$0x30] %vm403, %v402
    %s410 = scalar_lea.vmem %s1, 2
    %411 = vst.msk [vmem:[%s410] ss:$16 sm:$0xc0] %vm403, %v402
    %s412 = scalar_lea.vmem [#allocation0], 32
    %v413 = vld.sshfl [vmem:[%s412] sm:$0xff pattern:$0x99999810]
    %s414 = scalar_lea.vmem [#allocation0], 48
    %v415 = vld.sshfl [vmem:[%s414] sm:$0xff pattern:$0x98100000]
    %vm416 = vcmask 1047556
    %v417 = vsel %vm416, %v415, %v413
    %418 = vrot.lane.b32.xlu0 %v417, 124
    %v419 = vpop.permute.xlu0 %418
    %vm420 = vcmask 15360
    %s421 = scalar_lea.vmem %s1, 130
    %422 = vst.msk [vmem:[%s421] ss:$16 sm:$0x3] %vm420, %v419
    %s423 = scalar_lea.vmem %s1, 130
    %424 = vst.msk [vmem:[%s423] ss:$16 sm:$0xc] %vm420, %v419
    %s425 = scalar_lea.vmem %s1, 130
    %426 = vst.msk [vmem:[%s425] ss:$16 sm:$0x30] %vm420, %v419
    %s427 = scalar_lea.vmem %s1, 130
    %428 = vst.msk [vmem:[%s427] ss:$16 sm:$0xc0] %vm420, %v419
    %s429 = scalar_lea.vmem [#allocation0], 64
    %v430 = vld.sshfl [vmem:[%s429] sm:$0xff pattern:$0x99999810]
    %s431 = scalar_lea.vmem [#allocation0], 80
    %v432 = vld.sshfl [vmem:[%s431] sm:$0xff pattern:$0x98100000]
    %vm433 = vcmask 1047556
    %v434 = vsel %vm433, %v432, %v430
    %435 = vrot.lane.b32.xlu0 %v434, 124
    %v436 = vpop.permute.xlu0 %435
    %vm437 = vcmask 15360
    %s438 = scalar_lea.vmem %s1, 258
    %439 = vst.msk [vmem:[%s438] ss:$16 sm:$0x3] %vm437, %v436
    %s440 = scalar_lea.vmem %s1, 258
    %441 = vst.msk [vmem:[%s440] ss:$16 sm:$0xc] %vm437, %v436
    %s442 = scalar_lea.vmem %s1, 258
    %443 = vst.msk [vmem:[%s442] ss:$16 sm:$0x30] %vm437, %v436
    %s444 = scalar_lea.vmem %s1, 258
    %445 = vst.msk [vmem:[%s444] ss:$16 sm:$0xc0] %vm437, %v436
    %s446 = scalar_lea.vmem [#allocation0], 96
    %v447 = vld.sshfl [vmem:[%s446] sm:$0xff pattern:$0x99999810]
    %s448 = scalar_lea.vmem [#allocation0], 112
    %v449 = vld.sshfl [vmem:[%s448] sm:$0xff pattern:$0x98100000]
    %vm450 = vcmask 1047556
    %v451 = vsel %vm450, %v449, %v447
    %452 = vrot.lane.b32.xlu0 %v451, 124
    %v453 = vpop.permute.xlu0 %452
    %vm454 = vcmask 15360
    %s455 = scalar_lea.vmem %s1, 386
    %456 = vst.msk [vmem:[%s455] ss:$16 sm:$0x3] %vm454, %v453
    %s457 = scalar_lea.vmem %s1, 386
    %458 = vst.msk [vmem:[%s457] ss:$16 sm:$0xc] %vm454, %v453
    %s459 = scalar_lea.vmem %s1, 386
    %460 = vst.msk [vmem:[%s459] ss:$16 sm:$0x30] %vm454, %v453
    %s461 = scalar_lea.vmem %s1, 386
    %462 = vst.msk [vmem:[%s461] ss:$16 sm:$0xc0] %vm454, %v453
    %s463 = scalar_lea.vmem [#allocation0], 128
    %v464 = vld.sshfl [vmem:[%s463] sm:$0xff pattern:$0x99999810]
    %s465 = scalar_lea.vmem [#allocation0], 144
    %v466 = vld.sshfl [vmem:[%s465] sm:$0xff pattern:$0x98100000]
    %vm467 = vcmask 1047556
    %v468 = vsel %vm467, %v466, %v464
    %469 = vrot.lane.b32.xlu0 %v468, 124
    %v470 = vpop.permute.xlu0 %469
    %vm471 = vcmask 15360
    %s472 = scalar_lea.vmem %s1, 514
    %473 = vst.msk [vmem:[%s472] ss:$16 sm:$0x3] %vm471, %v470
    %s474 = scalar_lea.vmem %s1, 514
    %475 = vst.msk [vmem:[%s474] ss:$16 sm:$0xc] %vm471, %v470
    %s476 = scalar_lea.vmem %s1, 514
    %477 = vst.msk [vmem:[%s476] ss:$16 sm:$0x30] %vm471, %v470
    %s478 = scalar_lea.vmem %s1, 514
    %479 = vst.msk [vmem:[%s478] ss:$16 sm:$0xc0] %vm471, %v470
    %s480 = scalar_lea.vmem [#allocation0], 160
    %v481 = vld.sshfl [vmem:[%s480] sm:$0xff pattern:$0x99999810]
    %s482 = scalar_lea.vmem [#allocation0], 176
    %v483 = vld.sshfl [vmem:[%s482] sm:$0xff pattern:$0x98100000]
    %vm484 = vcmask 1047556
    %v485 = vsel %vm484, %v483, %v481
    %486 = vrot.lane.b32.xlu0 %v485, 124
    %v487 = vpop.permute.xlu0 %486
    %vm488 = vcmask 15360
    %s489 = scalar_lea.vmem %s1, 642
    %490 = vst.msk [vmem:[%s489] ss:$16 sm:$0x3] %vm488, %v487
    %s491 = scalar_lea.vmem %s1, 642
    %492 = vst.msk [vmem:[%s491] ss:$16 sm:$0xc] %vm488, %v487
    %s493 = scalar_lea.vmem %s1, 642
    %494 = vst.msk [vmem:[%s493] ss:$16 sm:$0x30] %vm488, %v487
    %s495 = scalar_lea.vmem %s1, 642
    %496 = vst.msk [vmem:[%s495] ss:$16 sm:$0xc0] %vm488, %v487
    %s497 = scalar_lea.vmem [#allocation0], 192
    %v498 = vld.sshfl [vmem:[%s497] sm:$0xff pattern:$0x99999810]
    %s499 = scalar_lea.vmem [#allocation0], 208
    %v500 = vld.sshfl [vmem:[%s499] sm:$0xff pattern:$0x98100000]
    %vm501 = vcmask 1047556
    %v502 = vsel %vm501, %v500, %v498
    %503 = vrot.lane.b32.xlu0 %v502, 124
    %v504 = vpop.permute.xlu0 %503
    %vm505 = vcmask 15360
    %s506 = scalar_lea.vmem %s1, 770
    %507 = vst.msk [vmem:[%s506] ss:$16 sm:$0x3] %vm505, %v504
    %s508 = scalar_lea.vmem %s1, 770
    %509 = vst.msk [vmem:[%s508] ss:$16 sm:$0xc] %vm505, %v504
    %s510 = scalar_lea.vmem %s1, 770
    %511 = vst.msk [vmem:[%s510] ss:$16 sm:$0x30] %vm505, %v504
    %s512 = scalar_lea.vmem %s1, 770
    %513 = vst.msk [vmem:[%s512] ss:$16 sm:$0xc0] %vm505, %v504
    %v514 = vld.sshfl [vmem:[#allocation0] sm:$0xff pattern:$0x99999810]
    %s515 = scalar_lea.vmem [#allocation0], 16
    %v516 = vld.sshfl [vmem:[%s515] sm:$0xff pattern:$0x98100000]
    %vm517 = vcmask 1047556
    %v518 = vsel %vm517, %v516, %v514
    %519 = vrot.lane.b32.xlu0 %v518, 122
    %v520 = vpop.permute.xlu0 %519
    %vm521 = vcmask 15360
    %s522 = scalar_lea.vmem %s1, 3
    %523 = vst.msk [vmem:[%s522] ss:$16 sm:$0x3] %vm521, %v520
    %s524 = scalar_lea.vmem %s1, 3
    %525 = vst.msk [vmem:[%s524] ss:$16 sm:$0xc] %vm521, %v520
    %s526 = scalar_lea.vmem %s1, 3
    %527 = vst.msk [vmem:[%s526] ss:$16 sm:$0x30] %vm521, %v520
    %s528 = scalar_lea.vmem %s1, 3
    %529 = vst.msk [vmem:[%s528] ss:$16 sm:$0xc0] %vm521, %v520
    %s530 = scalar_lea.vmem [#allocation0], 32
    %v531 = vld.sshfl [vmem:[%s530] sm:$0xff pattern:$0x99999810]
    %s532 = scalar_lea.vmem [#allocation0], 48
    %v533 = vld.sshfl [vmem:[%s532] sm:$0xff pattern:$0x98100000]
    %vm534 = vcmask 1047556
    %v535 = vsel %vm534, %v533, %v531
    %536 = vrot.lane.b32.xlu0 %v535, 122
    %v537 = vpop.permute.xlu0 %536
    %vm538 = vcmask 15360
    %s539 = scalar_lea.vmem %s1, 131
    %540 = vst.msk [vmem:[%s539] ss:$16 sm:$0x3] %vm538, %v537
    %s541 = scalar_lea.vmem %s1, 131
    %542 = vst.msk [vmem:[%s541] ss:$16 sm:$0xc] %vm538, %v537
    %s543 = scalar_lea.vmem %s1, 131
    %544 = vst.msk [vmem:[%s543] ss:$16 sm:$0x30] %vm538, %v537
    %s545 = scalar_lea.vmem %s1, 131
    %546 = vst.msk [vmem:[%s545] ss:$16 sm:$0xc0] %vm538, %v537
    %s547 = scalar_lea.vmem [#allocation0], 64
    %v548 = vld.sshfl [vmem:[%s547] sm:$0xff pattern:$0x99999810]
    %s549 = scalar_lea.vmem [#allocation0], 80
    %v550 = vld.sshfl [vmem:[%s549] sm:$0xff pattern:$0x98100000]
    %vm551 = vcmask 1047556
    %v552 = vsel %vm551, %v550, %v548
    %553 = vrot.lane.b32.xlu0 %v552, 122
    %v554 = vpop.permute.xlu0 %553
    %vm555 = vcmask 15360
    %s556 = scalar_lea.vmem %s1, 259
    %557 = vst.msk [vmem:[%s556] ss:$16 sm:$0x3] %vm555, %v554
    %s558 = scalar_lea.vmem %s1, 259
    %559 = vst.msk [vmem:[%s558] ss:$16 sm:$0xc] %vm555, %v554
    %s560 = scalar_lea.vmem %s1, 259
    %561 = vst.msk [vmem:[%s560] ss:$16 sm:$0x30] %vm555, %v554
    %s562 = scalar_lea.vmem %s1, 259
    %563 = vst.msk [vmem:[%s562] ss:$16 sm:$0xc0] %vm555, %v554
    %s564 = scalar_lea.vmem [#allocation0], 96
    %v565 = vld.sshfl [vmem:[%s564] sm:$0xff pattern:$0x99999810]
    %s566 = scalar_lea.vmem [#allocation0], 112
    %v567 = vld.sshfl [vmem:[%s566] sm:$0xff pattern:$0x98100000]
    %vm568 = vcmask 1047556
    %v569 = vsel %vm568, %v567, %v565
    %570 = vrot.lane.b32.xlu0 %v569, 122
    %v571 = vpop.permute.xlu0 %570
    %vm572 = vcmask 15360
    %s573 = scalar_lea.vmem %s1, 387
    %574 = vst.msk [vmem:[%s573] ss:$16 sm:$0x3] %vm572, %v571
    %s575 = scalar_lea.vmem %s1, 387
    %576 = vst.msk [vmem:[%s575] ss:$16 sm:$0xc] %vm572, %v571
    %s577 = scalar_lea.vmem %s1, 387
    %578 = vst.msk [vmem:[%s577] ss:$16 sm:$0x30] %vm572, %v571
    %s579 = scalar_lea.vmem %s1, 387
    %580 = vst.msk [vmem:[%s579] ss:$16 sm:$0xc0] %vm572, %v571
    %s581 = scalar_lea.vmem [#allocation0], 128
    %v582 = vld.sshfl [vmem:[%s581] sm:$0xff pattern:$0x99999810]
    %s583 = scalar_lea.vmem [#allocation0], 144
    %v584 = vld.sshfl [vmem:[%s583] sm:$0xff pattern:$0x98100000]
    %vm585 = vcmask 1047556
    %v586 = vsel %vm585, %v584, %v582
    %587 = vrot.lane.b32.xlu0 %v586, 122
    %v588 = vpop.permute.xlu0 %587
    %vm589 = vcmask 15360
    %s590 = scalar_lea.vmem %s1, 515
    %591 = vst.msk [vmem:[%s590] ss:$16 sm:$0x3] %vm589, %v588
    %s592 = scalar_lea.vmem %s1, 515
    %593 = vst.msk [vmem:[%s592] ss:$16 sm:$0xc] %vm589, %v588
    %s594 = scalar_lea.vmem %s1, 515
    %595 = vst.msk [vmem:[%s594] ss:$16 sm:$0x30] %vm589, %v588
    %s596 = scalar_lea.vmem %s1, 515
    %597 = vst.msk [vmem:[%s596] ss:$16 sm:$0xc0] %vm589, %v588
    %s598 = scalar_lea.vmem [#allocation0], 160
    %v599 = vld.sshfl [vmem:[%s598] sm:$0xff pattern:$0x99999810]
    %s600 = scalar_lea.vmem [#allocation0], 176
    %v601 = vld.sshfl [vmem:[%s600] sm:$0xff pattern:$0x98100000]
    %vm602 = vcmask 1047556
    %v603 = vsel %vm602, %v601, %v599
    %604 = vrot.lane.b32.xlu0 %v603, 122
    %v605 = vpop.permute.xlu0 %604
    %vm606 = vcmask 15360
    %s607 = scalar_lea.vmem %s1, 643
    %608 = vst.msk [vmem:[%s607] ss:$16 sm:$0x3] %vm606, %v605
    %s609 = scalar_lea.vmem %s1, 643
    %610 = vst.msk [vmem:[%s609] ss:$16 sm:$0xc] %vm606, %v605
    %s611 = scalar_lea.vmem %s1, 643
    %612 = vst.msk [vmem:[%s611] ss:$16 sm:$0x30] %vm606, %v605
    %s613 = scalar_lea.vmem %s1, 643
    %614 = vst.msk [vmem:[%s613] ss:$16 sm:$0xc0] %vm606, %v605
    %s615 = scalar_lea.vmem [#allocation0], 192
    %v616 = vld.sshfl [vmem:[%s615] sm:$0xff pattern:$0x99999810]
    %s617 = scalar_lea.vmem [#allocation0], 208
    %v618 = vld.sshfl [vmem:[%s617] sm:$0xff pattern:$0x98100000]
    %vm619 = vcmask 1047556
    %v620 = vsel %vm619, %v618, %v616
    %621 = vrot.lane.b32.xlu0 %v620, 122
    %v622 = vpop.permute.xlu0 %621
    %vm623 = vcmask 15360
    %s624 = scalar_lea.vmem %s1, 771
    %625 = vst.msk [vmem:[%s624] ss:$16 sm:$0x3] %vm623, %v622
    %s626 = scalar_lea.vmem %s1, 771
    %627 = vst.msk [vmem:[%s626] ss:$16 sm:$0xc] %vm623, %v622
    %s628 = scalar_lea.vmem %s1, 771
    %629 = vst.msk [vmem:[%s628] ss:$16 sm:$0x30] %vm623, %v622
    %s630 = scalar_lea.vmem %s1, 771
    %631 = vst.msk [vmem:[%s630] ss:$16 sm:$0xc0] %vm623, %v622
    %v632 = vld.sshfl [vmem:[#allocation0] sm:$0xff pattern:$0x99999810]
    %s633 = scalar_lea.vmem [#allocation0], 16
    %v634 = vld.sshfl [vmem:[%s633] sm:$0xff pattern:$0x98100000]
    %vm635 = vcmask 1047556
    %v636 = vsel %vm635, %v634, %v632
    %637 = vrot.lane.b32.xlu0 %v636, 120
    %v638 = vpop.permute.xlu0 %637
    %vm639 = vcmask 15360
    %s640 = scalar_lea.vmem %s1, 4
    %641 = vst.msk [vmem:[%s640] ss:$16 sm:$0x3] %vm639, %v638
    %s642 = scalar_lea.vmem %s1, 4
    %643 = vst.msk [vmem:[%s642] ss:$16 sm:$0xc] %vm639, %v638
    %s644 = scalar_lea.vmem %s1, 4
    %645 = vst.msk [vmem:[%s644] ss:$16 sm:$0x30] %vm639, %v638
    %s646 = scalar_lea.vmem %s1, 4
    %647 = vst.msk [vmem:[%s646] ss:$16 sm:$0xc0] %vm639, %v638
    %s648 = scalar_lea.vmem [#allocation0], 32
    %v649 = vld.sshfl [vmem:[%s648] sm:$0xff pattern:$0x99999810]
    %s650 = scalar_lea.vmem [#allocation0], 48
    %v651 = vld.sshfl [vmem:[%s650] sm:$0xff pattern:$0x98100000]
    %vm652 = vcmask 1047556
    %v653 = vsel %vm652, %v651, %v649
    %654 = vrot.lane.b32.xlu0 %v653, 120
    %v655 = vpop.permute.xlu0 %654
    %vm656 = vcmask 15360
    %s657 = scalar_lea.vmem %s1, 132
    %658 = vst.msk [vmem:[%s657] ss:$16 sm:$0x3] %vm656, %v655
    %s659 = scalar_lea.vmem %s1, 132
    %660 = vst.msk [vmem:[%s659] ss:$16 sm:$0xc] %vm656, %v655
    %s661 = scalar_lea.vmem %s1, 132
    %662 = vst.msk [vmem:[%s661] ss:$16 sm:$0x30] %vm656, %v655
    %s663 = scalar_lea.vmem %s1, 132
    %664 = vst.msk [vmem:[%s663] ss:$16 sm:$0xc0] %vm656, %v655
    %s665 = scalar_lea.vmem [#allocation0], 64
    %v666 = vld.sshfl [vmem:[%s665] sm:$0xff pattern:$0x99999810]
    %s667 = scalar_lea.vmem [#allocation0], 80
    %v668 = vld.sshfl [vmem:[%s667] sm:$0xff pattern:$0x98100000]
    %vm669 = vcmask 1047556
    %v670 = vsel %vm669, %v668, %v666
    %671 = vrot.lane.b32.xlu0 %v670, 120
    %v672 = vpop.permute.xlu0 %671
    %vm673 = vcmask 15360
    %s674 = scalar_lea.vmem %s1, 260
    %675 = vst.msk [vmem:[%s674] ss:$16 sm:$0x3] %vm673, %v672
    %s676 = scalar_lea.vmem %s1, 260
    %677 = vst.msk [vmem:[%s676] ss:$16 sm:$0xc] %vm673, %v672
    %s678 = scalar_lea.vmem %s1, 260
    %679 = vst.msk [vmem:[%s678] ss:$16 sm:$0x30] %vm673, %v672
    %s680 = scalar_lea.vmem %s1, 260
    %681 = vst.msk [vmem:[%s680] ss:$16 sm:$0xc0] %vm673, %v672
    %s682 = scalar_lea.vmem [#allocation0], 96
    %v683 = vld.sshfl [vmem:[%s682] sm:$0xff pattern:$0x99999810]
    %s684 = scalar_lea.vmem [#allocation0], 112
    %v685 = vld.sshfl [vmem:[%s684] sm:$0xff pattern:$0x98100000]
    %vm686 = vcmask 1047556
    %v687 = vsel %vm686, %v685, %v683
    %688 = vrot.lane.b32.xlu0 %v687, 120
    %v689 = vpop.permute.xlu0 %688
    %vm690 = vcmask 15360
    %s691 = scalar_lea.vmem %s1, 388
    %692 = vst.msk [vmem:[%s691] ss:$16 sm:$0x3] %vm690, %v689
    %s693 = scalar_lea.vmem %s1, 388
    %694 = vst.msk [vmem:[%s693] ss:$16 sm:$0xc] %vm690, %v689
    %s695 = scalar_lea.vmem %s1, 388
    %696 = vst.msk [vmem:[%s695] ss:$16 sm:$0x30] %vm690, %v689
    %s697 = scalar_lea.vmem %s1, 388
    %698 = vst.msk [vmem:[%s697] ss:$16 sm:$0xc0] %vm690, %v689
    %s699 = scalar_lea.vmem [#allocation0], 128
    %v700 = vld.sshfl [vmem:[%s699] sm:$0xff pattern:$0x99999810]
    %s701 = scalar_lea.vmem [#allocation0], 144
    %v702 = vld.sshfl [vmem:[%s701] sm:$0xff pattern:$0x98100000]
    %vm703 = vcmask 1047556
    %v704 = vsel %vm703, %v702, %v700
    %705 = vrot.lane.b32.xlu0 %v704, 120
    %v706 = vpop.permute.xlu0 %705
    %vm707 = vcmask 15360
    %s708 = scalar_lea.vmem %s1, 516
    %709 = vst.msk [vmem:[%s708] ss:$16 sm:$0x3] %vm707, %v706
    %s710 = scalar_lea.vmem %s1, 516
    %711 = vst.msk [vmem:[%s710] ss:$16 sm:$0xc] %vm707, %v706
    %s712 = scalar_lea.vmem %s1, 516
    %713 = vst.msk [vmem:[%s712] ss:$16 sm:$0x30] %vm707, %v706
    %s714 = scalar_lea.vmem %s1, 516
    %715 = vst.msk [vmem:[%s714] ss:$16 sm:$0xc0] %vm707, %v706
    %s716 = scalar_lea.vmem [#allocation0], 160
    %v717 = vld.sshfl [vmem:[%s716] sm:$0xff pattern:$0x99999810]
    %s718 = scalar_lea.vmem [#allocation0], 176
    %v719 = vld.sshfl [vmem:[%s718] sm:$0xff pattern:$0x98100000]
    %vm720 = vcmask 1047556
    %v721 = vsel %vm720, %v719, %v717
    %722 = vrot.lane.b32.xlu0 %v721, 120
    %v723 = vpop.permute.xlu0 %722
    %vm724 = vcmask 15360
    %s725 = scalar_lea.vmem %s1, 644
    %726 = vst.msk [vmem:[%s725] ss:$16 sm:$0x3] %vm724, %v723
    %s727 = scalar_lea.vmem %s1, 644
    %728 = vst.msk [vmem:[%s727] ss:$16 sm:$0xc] %vm724, %v723
    %s729 = scalar_lea.vmem %s1, 644
    %730 = vst.msk [vmem:[%s729] ss:$16 sm:$0x30] %vm724, %v723
    %s731 = scalar_lea.vmem %s1, 644
    %732 = vst.msk [vmem:[%s731] ss:$16 sm:$0xc0] %vm724, %v723
    %s733 = scalar_lea.vmem [#allocation0], 192
    %v734 = vld.sshfl [vmem:[%s733] sm:$0xff pattern:$0x99999810]
    %s735 = scalar_lea.vmem [#allocation0], 208
    %v736 = vld.sshfl [vmem:[%s735] sm:$0xff pattern:$0x98100000]
    %vm737 = vcmask 1047556
    %v738 = vsel %vm737, %v736, %v734
    %739 = vrot.lane.b32.xlu0 %v738, 120
    %v740 = vpop.permute.xlu0 %739
    %vm741 = vcmask 15360
    %s742 = scalar_lea.vmem %s1, 772
    %743 = vst.msk [vmem:[%s742] ss:$16 sm:$0x3] %vm741, %v740
    %s744 = scalar_lea.vmem %s1, 772
    %745 = vst.msk [vmem:[%s744] ss:$16 sm:$0xc] %vm741, %v740
    %s746 = scalar_lea.vmem %s1, 772
    %747 = vst.msk [vmem:[%s746] ss:$16 sm:$0x30] %vm741, %v740
    %s748 = scalar_lea.vmem %s1, 772
    %749 = vst.msk [vmem:[%s748] ss:$16 sm:$0xc0] %vm741, %v740
    %v750 = vld.sshfl [vmem:[#allocation0] sm:$0xff pattern:$0x99999810]
    %s751 = scalar_lea.vmem [#allocation0], 16
    %v752 = vld.sshfl [vmem:[%s751] sm:$0xff pattern:$0x98100000]
    %vm753 = vcmask 1047556
    %v754 = vsel %vm753, %v752, %v750
    %755 = vrot.lane.b32.xlu0 %v754, 118
    %v756 = vpop.permute.xlu0 %755
    %vm757 = vcmask 15360
    %s758 = scalar_lea.vmem %s1, 5
    %759 = vst.msk [vmem:[%s758] ss:$16 sm:$0x3] %vm757, %v756
    %s760 = scalar_lea.vmem %s1, 5
    %761 = vst.msk [vmem:[%s760] ss:$16 sm:$0xc] %vm757, %v756
    %s762 = scalar_lea.vmem %s1, 5
    %763 = vst.msk [vmem:[%s762] ss:$16 sm:$0x30] %vm757, %v756
    %s764 = scalar_lea.vmem %s1, 5
    %765 = vst.msk [vmem:[%s764] ss:$16 sm:$0xc0] %vm757, %v756
    %s766 = scalar_lea.vmem [#allocation0], 32
    %v767 = vld.sshfl [vmem:[%s766] sm:$0xff pattern:$0x99999810]
    %s768 = scalar_lea.vmem [#allocation0], 48
    %v769 = vld.sshfl [vmem:[%s768] sm:$0xff pattern:$0x98100000]
    %vm770 = vcmask 1047556
    %v771 = vsel %vm770, %v769, %v767
    %772 = vrot.lane.b32.xlu0 %v771, 118
    %v773 = vpop.permute.xlu0 %772
    %vm774 = vcmask 15360
    %s775 = scalar_lea.vmem %s1, 133
    %776 = vst.msk [vmem:[%s775] ss:$16 sm:$0x3] %vm774, %v773
    %s777 = scalar_lea.vmem %s1, 133
    %778 = vst.msk [vmem:[%s777] ss:$16 sm:$0xc] %vm774, %v773
    %s779 = scalar_lea.vmem %s1, 133
    %780 = vst.msk [vmem:[%s779] ss:$16 sm:$0x30] %vm774, %v773
    %s781 = scalar_lea.vmem %s1, 133
    %782 = vst.msk [vmem:[%s781] ss:$16 sm:$0xc0] %vm774, %v773
    %s783 = scalar_lea.vmem [#allocation0], 64
    %v784 = vld.sshfl [vmem:[%s783] sm:$0xff pattern:$0x99999810]
    %s785 = scalar_lea.vmem [#allocation0], 80
    %v786 = vld.sshfl [vmem:[%s785] sm:$0xff pattern:$0x98100000]
    %vm787 = vcmask 1047556
    %v788 = vsel %vm787, %v786, %v784
    %789 = vrot.lane.b32.xlu0 %v788, 118
    %v790 = vpop.permute.xlu0 %789
    %vm791 = vcmask 15360
    %s792 = scalar_lea.vmem %s1, 261
    %793 = vst.msk [vmem:[%s792] ss:$16 sm:$0x3] %vm791, %v790
    %s794 = scalar_lea.vmem %s1, 261
    %795 = vst.msk [vmem:[%s794] ss:$16 sm:$0xc] %vm791, %v790
    %s796 = scalar_lea.vmem %s1, 261
    %797 = vst.msk [vmem:[%s796] ss:$16 sm:$0x30] %vm791, %v790
    %s798 = scalar_lea.vmem %s1, 261
    %799 = vst.msk [vmem:[%s798] ss:$16 sm:$0xc0] %vm791, %v790
    %s800 = scalar_lea.vmem [#allocation0], 96
    %v801 = vld.sshfl [vmem:[%s800] sm:$0xff pattern:$0x99999810]
    %s802 = scalar_lea.vmem [#allocation0], 112
    %v803 = vld.sshfl [vmem:[%s802] sm:$0xff pattern:$0x98100000]
    %vm804 = vcmask 1047556
    %v805 = vsel %vm804, %v803, %v801
    %806 = vrot.lane.b32.xlu0 %v805, 118
    %v807 = vpop.permute.xlu0 %806
    %vm808 = vcmask 15360
    %s809 = scalar_lea.vmem %s1, 389
    %810 = vst.msk [vmem:[%s809] ss:$16 sm:$0x3] %vm808, %v807
    %s811 = scalar_lea.vmem %s1, 389
    %812 = vst.msk [vmem:[%s811] ss:$16 sm:$0xc] %vm808, %v807
    %s813 = scalar_lea.vmem %s1, 389
    %814 = vst.msk [vmem:[%s813] ss:$16 sm:$0x30] %vm808, %v807
    %s815 = scalar_lea.vmem %s1, 389
    %816 = vst.msk [vmem:[%s815] ss:$16 sm:$0xc0] %vm808, %v807
    %s817 = scalar_lea.vmem [#allocation0], 128
    %v818 = vld.sshfl [vmem:[%s817] sm:$0xff pattern:$0x99999810]
    %s819 = scalar_lea.vmem [#allocation0], 144
    %v820 = vld.sshfl [vmem:[%s819] sm:$0xff pattern:$0x98100000]
    %vm821 = vcmask 1047556
    %v822 = vsel %vm821, %v820, %v818
    %823 = vrot.lane.b32.xlu0 %v822, 118
    %v824 = vpop.permute.xlu0 %823
    %vm825 = vcmask 15360
    %s826 = scalar_lea.vmem %s1, 517
    %827 = vst.msk [vmem:[%s826] ss:$16 sm:$0x3] %vm825, %v824
    %s828 = scalar_lea.vmem %s1, 517
    %829 = vst.msk [vmem:[%s828] ss:$16 sm:$0xc] %vm825, %v824
    %s830 = scalar_lea.vmem %s1, 517
    %831 = vst.msk [vmem:[%s830] ss:$16 sm:$0x30] %vm825, %v824
    %s832 = scalar_lea.vmem %s1, 517
    %833 = vst.msk [vmem:[%s832] ss:$16 sm:$0xc0] %vm825, %v824
    %s834 = scalar_lea.vmem [#allocation0], 160
    %v835 = vld.sshfl [vmem:[%s834] sm:$0xff pattern:$0x99999810]
    %s836 = scalar_lea.vmem [#allocation0], 176
    %v837 = vld.sshfl [vmem:[%s836] sm:$0xff pattern:$0x98100000]
    %vm838 = vcmask 1047556
    %v839 = vsel %vm838, %v837, %v835
    %840 = vrot.lane.b32.xlu0 %v839, 118
    %v841 = vpop.permute.xlu0 %840
    %vm842 = vcmask 15360
    %s843 = scalar_lea.vmem %s1, 645
    %844 = vst.msk [vmem:[%s843] ss:$16 sm:$0x3] %vm842, %v841
    %s845 = scalar_lea.vmem %s1, 645
    %846 = vst.msk [vmem:[%s845] ss:$16 sm:$0xc] %vm842, %v841
    %s847 = scalar_lea.vmem %s1, 645
    %848 = vst.msk [vmem:[%s847] ss:$16 sm:$0x30] %vm842, %v841
    %s849 = scalar_lea.vmem %s1, 645
    %850 = vst.msk [vmem:[%s849] ss:$16 sm:$0xc0] %vm842, %v841
    %s851 = scalar_lea.vmem [#allocation0], 192
    %v852 = vld.sshfl [vmem:[%s851] sm:$0xff pattern:$0x99999810]
    %s853 = scalar_lea.vmem [#allocation0], 208
    %v854 = vld.sshfl [vmem:[%s853] sm:$0xff pattern:$0x98100000]
    %vm855 = vcmask 1047556
    %v856 = vsel %vm855, %v854, %v852
    %857 = vrot.lane.b32.xlu0 %v856, 118
    %v858 = vpop.permute.xlu0 %857
    %vm859 = vcmask 15360
    %s860 = scalar_lea.vmem %s1, 773
    %861 = vst.msk [vmem:[%s860] ss:$16 sm:$0x3] %vm859, %v858
    %s862 = scalar_lea.vmem %s1, 773
    %863 = vst.msk [vmem:[%s862] ss:$16 sm:$0xc] %vm859, %v858
    %s864 = scalar_lea.vmem %s1, 773
    %865 = vst.msk [vmem:[%s864] ss:$16 sm:$0x30] %vm859, %v858
    %s866 = scalar_lea.vmem %s1, 773
    %867 = vst.msk [vmem:[%s866] ss:$16 sm:$0xc0] %vm859, %v858
    %v868 = vld.sshfl [vmem:[#allocation0] sm:$0xff pattern:$0x99999810]
    %s869 = scalar_lea.vmem [#allocation0], 16
    %v870 = vld.sshfl [vmem:[%s869] sm:$0xff pattern:$0x98100000]
    %vm871 = vcmask 1047556
    %v872 = vsel %vm871, %v870, %v868
    %873 = vrot.lane.b32.xlu0 %v872, 116
    %v874 = vpop.permute.xlu0 %873
    %vm875 = vcmask 15360
    %s876 = scalar_lea.vmem %s1, 6
    %877 = vst.msk [vmem:[%s876] ss:$16 sm:$0x3] %vm875, %v874
    %s878 = scalar_lea.vmem %s1, 6
    %879 = vst.msk [vmem:[%s878] ss:$16 sm:$0xc] %vm875, %v874
    %s880 = scalar_lea.vmem %s1, 6
    %881 = vst.msk [vmem:[%s880] ss:$16 sm:$0x30] %vm875, %v874
    %s882 = scalar_lea.vmem %s1, 6
    %883 = vst.msk [vmem:[%s882] ss:$16 sm:$0xc0] %vm875, %v874
    %s884 = scalar_lea.vmem [#allocation0], 32
    %v885 = vld.sshfl [vmem:[%s884] sm:$0xff pattern:$0x99999810]
    %s886 = scalar_lea.vmem [#allocation0], 48
    %v887 = vld.sshfl [vmem:[%s886] sm:$0xff pattern:$0x98100000]
    %vm888 = vcmask 1047556
    %v889 = vsel %vm888, %v887, %v885
    %890 = vrot.lane.b32.xlu0 %v889, 116
    %v891 = vpop.permute.xlu0 %890
    %vm892 = vcmask 15360
    %s893 = scalar_lea.vmem %s1, 134
    %894 = vst.msk [vmem:[%s893] ss:$16 sm:$0x3] %vm892, %v891
    %s895 = scalar_lea.vmem %s1, 134
    %896 = vst.msk [vmem:[%s895] ss:$16 sm:$0xc] %vm892, %v891
    %s897 = scalar_lea.vmem %s1, 134
    %898 = vst.msk [vmem:[%s897] ss:$16 sm:$0x30] %vm892, %v891
    %s899 = scalar_lea.vmem %s1, 134
    %900 = vst.msk [vmem:[%s899] ss:$16 sm:$0xc0] %vm892, %v891
    %s901 = scalar_lea.vmem [#allocation0], 64
    %v902 = vld.sshfl [vmem:[%s901] sm:$0xff pattern:$0x99999810]
    %s903 = scalar_lea.vmem [#allocation0], 80
    %v904 = vld.sshfl [vmem:[%s903] sm:$0xff pattern:$0x98100000]
    %vm905 = vcmask 1047556
    %v906 = vsel %vm905, %v904, %v902
    %907 = vrot.lane.b32.xlu0 %v906, 116
    %v908 = vpop.permute.xlu0 %907
    %vm909 = vcmask 15360
    %s910 = scalar_lea.vmem %s1, 262
    %911 = vst.msk [vmem:[%s910] ss:$16 sm:$0x3] %vm909, %v908
    %s912 = scalar_lea.vmem %s1, 262
    %913 = vst.msk [vmem:[%s912] ss:$16 sm:$0xc] %vm909, %v908
    %s914 = scalar_lea.vmem %s1, 262
    %915 = vst.msk [vmem:[%s914] ss:$16 sm:$0x30] %vm909, %v908
    %s916 = scalar_lea.vmem %s1, 262
    %917 = vst.msk [vmem:[%s916] ss:$16 sm:$0xc0] %vm909, %v908
    %s918 = scalar_lea.vmem [#allocation0], 96
    %v919 = vld.sshfl [vmem:[%s918] sm:$0xff pattern:$0x99999810]
    %s920 = scalar_lea.vmem [#allocation0], 112
    %v921 = vld.sshfl [vmem:[%s920] sm:$0xff pattern:$0x98100000]
    %vm922 = vcmask 1047556
    %v923 = vsel %vm922, %v921, %v919
    %924 = vrot.lane.b32.xlu0 %v923, 116
    %v925 = vpop.permute.xlu0 %924
    %vm926 = vcmask 15360
    %s927 = scalar_lea.vmem %s1, 390
    %928 = vst.msk [vmem:[%s927] ss:$16 sm:$0x3] %vm926, %v925
    %s929 = scalar_lea.vmem %s1, 390
    %930 = vst.msk [vmem:[%s929] ss:$16 sm:$0xc] %vm926, %v925
    %s931 = scalar_lea.vmem %s1, 390
    %932 = vst.msk [vmem:[%s931] ss:$16 sm:$0x30] %vm926, %v925
    %s933 = scalar_lea.vmem %s1, 390
    %934 = vst.msk [vmem:[%s933] ss:$16 sm:$0xc0] %vm926, %v925
    %s935 = scalar_lea.vmem [#allocation0], 128
    %v936 = vld.sshfl [vmem:[%s935] sm:$0xff pattern:$0x99999810]
    %s937 = scalar_lea.vmem [#allocation0], 144
    %v938 = vld.sshfl [vmem:[%s937] sm:$0xff pattern:$0x98100000]
    %vm939 = vcmask 1047556
    %v940 = vsel %vm939, %v938, %v936
    %941 = vrot.lane.b32.xlu0 %v940, 116
    %v942 = vpop.permute.xlu0 %941
    %vm943 = vcmask 15360
    %s944 = scalar_lea.vmem %s1, 518
    %945 = vst.msk [vmem:[%s944] ss:$16 sm:$0x3] %vm943, %v942
    %s946 = scalar_lea.vmem %s1, 518
    %947 = vst.msk [vmem:[%s946] ss:$16 sm:$0xc] %vm943, %v942
    %s948 = scalar_lea.vmem %s1, 518
    %949 = vst.msk [vmem:[%s948] ss:$16 sm:$0x30] %vm943, %v942
    %s950 = scalar_lea.vmem %s1, 518
    %951 = vst.msk [vmem:[%s950] ss:$16 sm:$0xc0] %vm943, %v942
    %s952 = scalar_lea.vmem [#allocation0], 160
    %v953 = vld.sshfl [vmem:[%s952] sm:$0xff pattern:$0x99999810]
    %s954 = scalar_lea.vmem [#allocation0], 176
    %v955 = vld.sshfl [vmem:[%s954] sm:$0xff pattern:$0x98100000]
    %vm956 = vcmask 1047556
    %v957 = vsel %vm956, %v955, %v953
    %958 = vrot.lane.b32.xlu0 %v957, 116
    %v959 = vpop.permute.xlu0 %958
    %vm960 = vcmask 15360
    %s961 = scalar_lea.vmem %s1, 646
    %962 = vst.msk [vmem:[%s961] ss:$16 sm:$0x3] %vm960, %v959
    %s963 = scalar_lea.vmem %s1, 646
    %964 = vst.msk [vmem:[%s963] ss:$16 sm:$0xc] %vm960, %v959
    %s965 = scalar_lea.vmem %s1, 646
    %966 = vst.msk [vmem:[%s965] ss:$16 sm:$0x30] %vm960, %v959
    %s967 = scalar_lea.vmem %s1, 646
    %968 = vst.msk [vmem:[%s967] ss:$16 sm:$0xc0] %vm960, %v959
    %s969 = scalar_lea.vmem [#allocation0], 192
    %v970 = vld.sshfl [vmem:[%s969] sm:$0xff pattern:$0x99999810]
    %s971 = scalar_lea.vmem [#allocation0], 208
    %v972 = vld.sshfl [vmem:[%s971] sm:$0xff pattern:$0x98100000]
    %vm973 = vcmask 1047556
    %v974 = vsel %vm973, %v972, %v970
    %975 = vrot.lane.b32.xlu0 %v974, 116
    %v976 = vpop.permute.xlu0 %975
    %vm977 = vcmask 15360
    %s978 = scalar_lea.vmem %s1, 774
    %979 = vst.msk [vmem:[%s978] ss:$16 sm:$0x3] %vm977, %v976
    %s980 = scalar_lea.vmem %s1, 774
    %981 = vst.msk [vmem:[%s980] ss:$16 sm:$0xc] %vm977, %v976
    %s982 = scalar_lea.vmem %s1, 774
    %983 = vst.msk [vmem:[%s982] ss:$16 sm:$0x30] %vm977, %v976
    %s984 = scalar_lea.vmem %s1, 774
    %985 = vst.msk [vmem:[%s984] ss:$16 sm:$0xc0] %vm977, %v976
    %v986 = vld.sshfl [vmem:[#allocation0] sm:$0xff pattern:$0x99999810]
    %s987 = scalar_lea.vmem [#allocation0], 16
    %v988 = vld.sshfl [vmem:[%s987] sm:$0xff pattern:$0x98100000]
    %vm989 = vcmask 1047556
    %v990 = vsel %vm989, %v988, %v986
    %991 = vrot.lane.b32.xlu0 %v990, 114
    %v992 = vpop.permute.xlu0 %991
    %vm993 = vcmask 15360
    %s994 = scalar_lea.vmem %s1, 7
    %995 = vst.msk [vmem:[%s994] ss:$16 sm:$0x3] %vm993, %v992
    %s996 = scalar_lea.vmem %s1, 7
    %997 = vst.msk [vmem:[%s996] ss:$16 sm:$0xc] %vm993, %v992
    %s998 = scalar_lea.vmem %s1, 7
    %999 = vst.msk [vmem:[%s998] ss:$16 sm:$0x30] %vm993, %v992
    %s1000 = scalar_lea.vmem %s1, 7
    %1001 = vst.msk [vmem:[%s1000] ss:$16 sm:$0xc0] %vm993, %v992
    %s1002 = scalar_lea.vmem [#allocation0], 32
    %v1003 = vld.sshfl [vmem:[%s1002] sm:$0xff pattern:$0x99999810]
    %s1004 = scalar_lea.vmem [#allocation0], 48
    %v1005 = vld.sshfl [vmem:[%s1004] sm:$0xff pattern:$0x98100000]
    %vm1006 = vcmask 1047556
    %v1007 = vsel %vm1006, %v1005, %v1003
    %1008 = vrot.lane.b32.xlu0 %v1007, 114
    %v1009 = vpop.permute.xlu0 %1008
    %vm1010 = vcmask 15360
    %s1011 = scalar_lea.vmem %s1, 135
    %1012 = vst.msk [vmem:[%s1011] ss:$16 sm:$0x3] %vm1010, %v1009
    %s1013 = scalar_lea.vmem %s1, 135
    %1014 = vst.msk [vmem:[%s1013] ss:$16 sm:$0xc] %vm1010, %v1009
    %s1015 = scalar_lea.vmem %s1, 135
    %1016 = vst.msk [vmem:[%s1015] ss:$16 sm:$0x30] %vm1010, %v1009
    %s1017 = scalar_lea.vmem %s1, 135
    %1018 = vst.msk [vmem:[%s1017] ss:$16 sm:$0xc0] %vm1010, %v1009
    %s1019 = scalar_lea.vmem [#allocation0], 64
    %v1020 = vld.sshfl [vmem:[%s1019] sm:$0xff pattern:$0x99999810]
    %s1021 = scalar_lea.vmem [#allocation0], 80
    %v1022 = vld.sshfl [vmem:[%s1021] sm:$0xff pattern:$0x98100000]
    %vm1023 = vcmask 1047556
    %v1024 = vsel %vm1023, %v1022, %v1020
    %1025 = vrot.lane.b32.xlu0 %v1024, 114
    %v1026 = vpop.permute.xlu0 %1025
    %vm1027 = vcmask 15360
    %s1028 = scalar_lea.vmem %s1, 263
    %1029 = vst.msk [vmem:[%s1028] ss:$16 sm:$0x3] %vm1027, %v1026
    %s1030 = scalar_lea.vmem %s1, 263
    %1031 = vst.msk [vmem:[%s1030] ss:$16 sm:$0xc] %vm1027, %v1026
    %s1032 = scalar_lea.vmem %s1, 263
    %1033 = vst.msk [vmem:[%s1032] ss:$16 sm:$0x30] %vm1027, %v1026
    %s1034 = scalar_lea.vmem %s1, 263
    %1035 = vst.msk [vmem:[%s1034] ss:$16 sm:$0xc0] %vm1027, %v1026
    %s1036 = scalar_lea.vmem [#allocation0], 96
    %v1037 = vld.sshfl [vmem:[%s1036] sm:$0xff pattern:$0x99999810]
    %s1038 = scalar_lea.vmem [#allocation0], 112
    %v1039 = vld.sshfl [vmem:[%s1038] sm:$0xff pattern:$0x98100000]
    %vm1040 = vcmask 1047556
    %v1041 = vsel %vm1040, %v1039, %v1037
    %1042 = vrot.lane.b32.xlu0 %v1041, 114
    %v1043 = vpop.permute.xlu0 %1042
    %vm1044 = vcmask 15360
    %s1045 = scalar_lea.vmem %s1, 391
    %1046 = vst.msk [vmem:[%s1045] ss:$16 sm:$0x3] %vm1044, %v1043
    %s1047 = scalar_lea.vmem %s1, 391
    %1048 = vst.msk [vmem:[%s1047] ss:$16 sm:$0xc] %vm1044, %v1043
    %s1049 = scalar_lea.vmem %s1, 391
    %1050 = vst.msk [vmem:[%s1049] ss:$16 sm:$0x30] %vm1044, %v1043
    %s1051 = scalar_lea.vmem %s1, 391
    %1052 = vst.msk [vmem:[%s1051] ss:$16 sm:$0xc0] %vm1044, %v1043
    %s1053 = scalar_lea.vmem [#allocation0], 128
    %v1054 = vld.sshfl [vmem:[%s1053] sm:$0xff pattern:$0x99999810]
    %s1055 = scalar_lea.vmem [#allocation0], 144
    %v1056 = vld.sshfl [vmem:[%s1055] sm:$0xff pattern:$0x98100000]
    %vm1057 = vcmask 1047556
    %v1058 = vsel %vm1057, %v1056, %v1054
    %1059 = vrot.lane.b32.xlu0 %v1058, 114
    %v1060 = vpop.permute.xlu0 %1059
    %vm1061 = vcmask 15360
    %s1062 = scalar_lea.vmem %s1, 519
    %1063 = vst.msk [vmem:[%s1062] ss:$16 sm:$0x3] %vm1061, %v1060
    %s1064 = scalar_lea.vmem %s1, 519
    %1065 = vst.msk [vmem:[%s1064] ss:$16 sm:$0xc] %vm1061, %v1060
    %s1066 = scalar_lea.vmem %s1, 519
    %1067 = vst.msk [vmem:[%s1066] ss:$16 sm:$0x30] %vm1061, %v1060
    %s1068 = scalar_lea.vmem %s1, 519
    %1069 = vst.msk [vmem:[%s1068] ss:$16 sm:$0xc0] %vm1061, %v1060
    %s1070 = scalar_lea.vmem [#allocation0], 160
    %v1071 = vld.sshfl [vmem:[%s1070] sm:$0xff pattern:$0x99999810]
    %s1072 = scalar_lea.vmem [#allocation0], 176
    %v1073 = vld.sshfl [vmem:[%s1072] sm:$0xff pattern:$0x98100000]
    %vm1074 = vcmask 1047556
    %v1075 = vsel %vm1074, %v1073, %v1071
    %1076 = vrot.lane.b32.xlu0 %v1075, 114
    %v1077 = vpop.permute.xlu0 %1076
    %vm1078 = vcmask 15360
    %s1079 = scalar_lea.vmem %s1, 647
    %1080 = vst.msk [vmem:[%s1079] ss:$16 sm:$0x3] %vm1078, %v1077
    %s1081 = scalar_lea.vmem %s1, 647
    %1082 = vst.msk [vmem:[%s1081] ss:$16 sm:$0xc] %vm1078, %v1077
    %s1083 = scalar_lea.vmem %s1, 647
    %1084 = vst.msk [vmem:[%s1083] ss:$16 sm:$0x30] %vm1078, %v1077
    %s1085 = scalar_lea.vmem %s1, 647
    %1086 = vst.msk [vmem:[%s1085] ss:$16 sm:$0xc0] %vm1078, %v1077
    %s1087 = scalar_lea.vmem [#allocation0], 192
    %v1088 = vld.sshfl [vmem:[%s1087] sm:$0xff pattern:$0x99999810]
    %s1089 = scalar_lea.vmem [#allocation0], 208
    %v1090 = vld.sshfl [vmem:[%s1089] sm:$0xff pattern:$0x98100000]
    %vm1091 = vcmask 1047556
    %v1092 = vsel %vm1091, %v1090, %v1088
    %1093 = vrot.lane.b32.xlu0 %v1092, 114
    %v1094 = vpop.permute.xlu0 %1093
    %vm1095 = vcmask 15360
    %s1096 = scalar_lea.vmem %s1, 775
    %1097 = vst.msk [vmem:[%s1096] ss:$16 sm:$0x3] %vm1095, %v1094
    %s1098 = scalar_lea.vmem %s1, 775
    %1099 = vst.msk [vmem:[%s1098] ss:$16 sm:$0xc] %vm1095, %v1094
    %s1100 = scalar_lea.vmem %s1, 775
    %1101 = vst.msk [vmem:[%s1100] ss:$16 sm:$0x30] %vm1095, %v1094
    %s1102 = scalar_lea.vmem %s1, 775
    %1103 = vst.msk [vmem:[%s1102] ss:$16 sm:$0xc0] %vm1095, %v1094
    %v1104 = vld.sshfl [vmem:[#allocation0] sm:$0xff pattern:$0x99999810]
    %s1105 = scalar_lea.vmem [#allocation0], 16
    %v1106 = vld.sshfl [vmem:[%s1105] sm:$0xff pattern:$0x98100000]
    %vm1107 = vcmask 1047556
    %v1108 = vsel %vm1107, %v1106, %v1104
    %1109 = vrot.lane.b32.xlu0 %v1108, 112
    %v1110 = vpop.permute.xlu0 %1109
    %vm1111 = vcmask 15360
    %s1112 = scalar_lea.vmem %s1, 8
    %1113 = vst.msk [vmem:[%s1112] ss:$16 sm:$0x3] %vm1111, %v1110
    %s1114 = scalar_lea.vmem %s1, 8
    %1115 = vst.msk [vmem:[%s1114] ss:$16 sm:$0xc] %vm1111, %v1110
    %s1116 = scalar_lea.vmem %s1, 8
    %1117 = vst.msk [vmem:[%s1116] ss:$16 sm:$0x30] %vm1111, %v1110
    %s1118 = scalar_lea.vmem %s1, 8
    %1119 = vst.msk [vmem:[%s1118] ss:$16 sm:$0xc0] %vm1111, %v1110
    %s1120 = scalar_lea.vmem [#allocation0], 32
    %v1121 = vld.sshfl [vmem:[%s1120] sm:$0xff pattern:$0x99999810]
    %s1122 = scalar_lea.vmem [#allocation0], 48
    %v1123 = vld.sshfl [vmem:[%s1122] sm:$0xff pattern:$0x98100000]
    %vm1124 = vcmask 1047556
    %v1125 = vsel %vm1124, %v1123, %v1121
    %1126 = vrot.lane.b32.xlu0 %v1125, 112
    %v1127 = vpop.permute.xlu0 %1126
    %vm1128 = vcmask 15360
    %s1129 = scalar_lea.vmem %s1, 136
    %1130 = vst.msk [vmem:[%s1129] ss:$16 sm:$0x3] %vm1128, %v1127
    %s1131 = scalar_lea.vmem %s1, 136
    %1132 = vst.msk [vmem:[%s1131] ss:$16 sm:$0xc] %vm1128, %v1127
    %s1133 = scalar_lea.vmem %s1, 136
    %1134 = vst.msk [vmem:[%s1133] ss:$16 sm:$0x30] %vm1128, %v1127
    %s1135 = scalar_lea.vmem %s1, 136
    %1136 = vst.msk [vmem:[%s1135] ss:$16 sm:$0xc0] %vm1128, %v1127
    %s1137 = scalar_lea.vmem [#allocation0], 64
    %v1138 = vld.sshfl [vmem:[%s1137] sm:$0xff pattern:$0x99999810]
    %s1139 = scalar_lea.vmem [#allocation0], 80
    %v1140 = vld.sshfl [vmem:[%s1139] sm:$0xff pattern:$0x98100000]
    %vm1141 = vcmask 1047556
    %v1142 = vsel %vm1141, %v1140, %v1138
    %1143 = vrot.lane.b32.xlu0 %v1142, 112
    %v1144 = vpop.permute.xlu0 %1143
    %vm1145 = vcmask 15360
    %s1146 = scalar_lea.vmem %s1, 264
    %1147 = vst.msk [vmem:[%s1146] ss:$16 sm:$0x3] %vm1145, %v1144
    %s1148 = scalar_lea.vmem %s1, 264
    %1149 = vst.msk [vmem:[%s1148] ss:$16 sm:$0xc] %vm1145, %v1144
    %s1150 = scalar_lea.vmem %s1, 264
    %1151 = vst.msk [vmem:[%s1150] ss:$16 sm:$0x30] %vm1145, %v1144
    %s1152 = scalar_lea.vmem %s1, 264
    %1153 = vst.msk [vmem:[%s1152] ss:$16 sm:$0xc0] %vm1145, %v1144
    %s1154 = scalar_lea.vmem [#allocation0], 96
    %v1155 = vld.sshfl [vmem:[%s1154] sm:$0xff pattern:$0x99999810]
    %s1156 = scalar_lea.vmem [#allocation0], 112
    %v1157 = vld.sshfl [vmem:[%s1156] sm:$0xff pattern:$0x98100000]
    %vm1158 = vcmask 1047556
    %v1159 = vsel %vm1158, %v1157, %v1155
    %1160 = vrot.lane.b32.xlu0 %v1159, 112
    %v1161 = vpop.permute.xlu0 %1160
    %vm1162 = vcmask 15360
    %s1163 = scalar_lea.vmem %s1, 392
    %1164 = vst.msk [vmem:[%s1163] ss:$16 sm:$0x3] %vm1162, %v1161
    %s1165 = scalar_lea.vmem %s1, 392
    %1166 = vst.msk [vmem:[%s1165] ss:$16 sm:$0xc] %vm1162, %v1161
    %s1167 = scalar_lea.vmem %s1, 392
    %1168 = vst.msk [vmem:[%s1167] ss:$16 sm:$0x30] %vm1162, %v1161
    %s1169 = scalar_lea.vmem %s1, 392
    %1170 = vst.msk [vmem:[%s1169] ss:$16 sm:$0xc0] %vm1162, %v1161
    %s1171 = scalar_lea.vmem [#allocation0], 128
    %v1172 = vld.sshfl [vmem:[%s1171] sm:$0xff pattern:$0x99999810]
    %s1173 = scalar_lea.vmem [#allocation0], 144
    %v1174 = vld.sshfl [vmem:[%s1173] sm:$0xff pattern:$0x98100000]
    %vm1175 = vcmask 1047556
    %v1176 = vsel %vm1175, %v1174, %v1172
    %1177 = vrot.lane.b32.xlu0 %v1176, 112
    %v1178 = vpop.permute.xlu0 %1177
    %vm1179 = vcmask 15360
    %s1180 = scalar_lea.vmem %s1, 520
    %1181 = vst.msk [vmem:[%s1180] ss:$16 sm:$0x3] %vm1179, %v1178
    %s1182 = scalar_lea.vmem %s1, 520
    %1183 = vst.msk [vmem:[%s1182] ss:$16 sm:$0xc] %vm1179, %v1178
    %s1184 = scalar_lea.vmem %s1, 520
    %1185 = vst.msk [vmem:[%s1184] ss:$16 sm:$0x30] %vm1179, %v1178
    %s1186 = scalar_lea.vmem %s1, 520
    %1187 = vst.msk [vmem:[%s1186] ss:$16 sm:$0xc0] %vm1179, %v1178
    %s1188 = scalar_lea.vmem [#allocation0], 160
    %v1189 = vld.sshfl [vmem:[%s1188] sm:$0xff pattern:$0x99999810]
    %s1190 = scalar_lea.vmem [#allocation0], 176
    %v1191 = vld.sshfl [vmem:[%s1190] sm:$0xff pattern:$0x98100000]
    %vm1192 = vcmask 1047556
    %v1193 = vsel %vm1192, %v1191, %v1189
    %1194 = vrot.lane.b32.xlu0 %v1193, 112
    %v1195 = vpop.permute.xlu0 %1194
    %vm1196 = vcmask 15360
    %s1197 = scalar_lea.vmem %s1, 648
    %1198 = vst.msk [vmem:[%s1197] ss:$16 sm:$0x3] %vm1196, %v1195
    %s1199 = scalar_lea.vmem %s1, 648
    %1200 = vst.msk [vmem:[%s1199] ss:$16 sm:$0xc] %vm1196, %v1195
    %s1201 = scalar_lea.vmem %s1, 648
    %1202 = vst.msk [vmem:[%s1201] ss:$16 sm:$0x30] %vm1196, %v1195
    %s1203 = scalar_lea.vmem %s1, 648
    %1204 = vst.msk [vmem:[%s1203] ss:$16 sm:$0xc0] %vm1196, %v1195
    %s1205 = scalar_lea.vmem [#allocation0], 192
    %v1206 = vld.sshfl [vmem:[%s1205] sm:$0xff pattern:$0x99999810]
    %s1207 = scalar_lea.vmem [#allocation0], 208
    %v1208 = vld.sshfl [vmem:[%s1207] sm:$0xff pattern:$0x98100000]
    %vm1209 = vcmask 1047556
    %v1210 = vsel %vm1209, %v1208, %v1206
    %1211 = vrot.lane.b32.xlu0 %v1210, 112
    %v1212 = vpop.permute.xlu0 %1211
    %vm1213 = vcmask 15360
    %s1214 = scalar_lea.vmem %s1, 776
    %1215 = vst.msk [vmem:[%s1214] ss:$16 sm:$0x3] %vm1213, %v1212
    %s1216 = scalar_lea.vmem %s1, 776
    %1217 = vst.msk [vmem:[%s1216] ss:$16 sm:$0xc] %vm1213, %v1212
    %s1218 = scalar_lea.vmem %s1, 776
    %1219 = vst.msk [vmem:[%s1218] ss:$16 sm:$0x30] %vm1213, %v1212
    %s1220 = scalar_lea.vmem %s1, 776
    %1221 = vst.msk [vmem:[%s1220] ss:$16 sm:$0xc0] %vm1213, %v1212
    %v1222 = vld.sshfl [vmem:[#allocation0] sm:$0xff pattern:$0x99999810]
    %s1223 = scalar_lea.vmem [#allocation0], 16
    %v1224 = vld.sshfl [vmem:[%s1223] sm:$0xff pattern:$0x98100000]
    %vm1225 = vcmask 1047556
    %v1226 = vsel %vm1225, %v1224, %v1222
    %1227 = vrot.lane.b32.xlu0 %v1226, 110
    %v1228 = vpop.permute.xlu0 %1227
    %vm1229 = vcmask 15360
    %s1230 = scalar_lea.vmem %s1, 9
    %1231 = vst.msk [vmem:[%s1230] ss:$16 sm:$0x3] %vm1229, %v1228
    %s1232 = scalar_lea.vmem %s1, 9
    %1233 = vst.msk [vmem:[%s1232] ss:$16 sm:$0xc] %vm1229, %v1228
    %s1234 = scalar_lea.vmem %s1, 9
    %1235 = vst.msk [vmem:[%s1234] ss:$16 sm:$0x30] %vm1229, %v1228
    %s1236 = scalar_lea.vmem %s1, 9
    %1237 = vst.msk [vmem:[%s1236] ss:$16 sm:$0xc0] %vm1229, %v1228
    %s1238 = scalar_lea.vmem [#allocation0], 32
    %v1239 = vld.sshfl [vmem:[%s1238] sm:$0xff pattern:$0x99999810]
    %s1240 = scalar_lea.vmem [#allocation0], 48
    %v1241 = vld.sshfl [vmem:[%s1240] sm:$0xff pattern:$0x98100000]
    %vm1242 = vcmask 1047556
    %v1243 = vsel %vm1242, %v1241, %v1239
    %1244 = vrot.lane.b32.xlu0 %v1243, 110
    %v1245 = vpop.permute.xlu0 %1244
    %vm1246 = vcmask 15360
    %s1247 = scalar_lea.vmem %s1, 137
    %1248 = vst.msk [vmem:[%s1247] ss:$16 sm:$0x3] %vm1246, %v1245
    %s1249 = scalar_lea.vmem %s1, 137
    %1250 = vst.msk [vmem:[%s1249] ss:$16 sm:$0xc] %vm1246, %v1245
    %s1251 = scalar_lea.vmem %s1, 137
    %1252 = vst.msk [vmem:[%s1251] ss:$16 sm:$0x30] %vm1246, %v1245
    %s1253 = scalar_lea.vmem %s1, 137
    %1254 = vst.msk [vmem:[%s1253] ss:$16 sm:$0xc0] %vm1246, %v1245
    %s1255 = scalar_lea.vmem [#allocation0], 64
    %v1256 = vld.sshfl [vmem:[%s1255] sm:$0xff pattern:$0x99999810]
    %s1257 = scalar_lea.vmem [#allocation0], 80
    %v1258 = vld.sshfl [vmem:[%s1257] sm:$0xff pattern:$0x98100000]
    %vm1259 = vcmask 1047556
    %v1260 = vsel %vm1259, %v1258, %v1256
    %1261 = vrot.lane.b32.xlu0 %v1260, 110
    %v1262 = vpop.permute.xlu0 %1261
    %vm1263 = vcmask 15360
    %s1264 = scalar_lea.vmem %s1, 265
    %1265 = vst.msk [vmem:[%s1264] ss:$16 sm:$0x3] %vm1263, %v1262
    %s1266 = scalar_lea.vmem %s1, 265
    %1267 = vst.msk [vmem:[%s1266] ss:$16 sm:$0xc] %vm1263, %v1262
    %s1268 = scalar_lea.vmem %s1, 265
    %1269 = vst.msk [vmem:[%s1268] ss:$16 sm:$0x30] %vm1263, %v1262
    %s1270 = scalar_lea.vmem %s1, 265
    %1271 = vst.msk [vmem:[%s1270] ss:$16 sm:$0xc0] %vm1263, %v1262
    %s1272 = scalar_lea.vmem [#allocation0], 96
    %v1273 = vld.sshfl [vmem:[%s1272] sm:$0xff pattern:$0x99999810]
    %s1274 = scalar_lea.vmem [#allocation0], 112
    %v1275 = vld.sshfl [vmem:[%s1274] sm:$0xff pattern:$0x98100000]
    %vm1276 = vcmask 1047556
    %v1277 = vsel %vm1276, %v1275, %v1273
    %1278 = vrot.lane.b32.xlu0 %v1277, 110
    %v1279 = vpop.permute.xlu0 %1278
    %vm1280 = vcmask 15360
    %s1281 = scalar_lea.vmem %s1, 393
    %1282 = vst.msk [vmem:[%s1281] ss:$16 sm:$0x3] %vm1280, %v1279
    %s1283 = scalar_lea.vmem %s1, 393
    %1284 = vst.msk [vmem:[%s1283] ss:$16 sm:$0xc] %vm1280, %v1279
    %s1285 = scalar_lea.vmem %s1, 393
    %1286 = vst.msk [vmem:[%s1285] ss:$16 sm:$0x30] %vm1280, %v1279
    %s1287 = scalar_lea.vmem %s1, 393
    %1288 = vst.msk [vmem:[%s1287] ss:$16 sm:$0xc0] %vm1280, %v1279
    %s1289 = scalar_lea.vmem [#allocation0], 128
    %v1290 = vld.sshfl [vmem:[%s1289] sm:$0xff pattern:$0x99999810]
    %s1291 = scalar_lea.vmem [#allocation0], 144
    %v1292 = vld.sshfl [vmem:[%s1291] sm:$0xff pattern:$0x98100000]
    %vm1293 = vcmask 1047556
    %v1294 = vsel %vm1293, %v1292, %v1290
    %1295 = vrot.lane.b32.xlu0 %v1294, 110
    %v1296 = vpop.permute.xlu0 %1295
    %vm1297 = vcmask 15360
    %s1298 = scalar_lea.vmem %s1, 521
    %1299 = vst.msk [vmem:[%s1298] ss:$16 sm:$0x3] %vm1297, %v1296
    %s1300 = scalar_lea.vmem %s1, 521
    %1301 = vst.msk [vmem:[%s1300] ss:$16 sm:$0xc] %vm1297, %v1296
    %s1302 = scalar_lea.vmem %s1, 521
    %1303 = vst.msk [vmem:[%s1302] ss:$16 sm:$0x30] %vm1297, %v1296
    %s1304 = scalar_lea.vmem %s1, 521
    %1305 = vst.msk [vmem:[%s1304] ss:$16 sm:$0xc0] %vm1297, %v1296
    %s1306 = scalar_lea.vmem [#allocation0], 160
    %v1307 = vld.sshfl [vmem:[%s1306] sm:$0xff pattern:$0x99999810]
    %s1308 = scalar_lea.vmem [#allocation0], 176
    %v1309 = vld.sshfl [vmem:[%s1308] sm:$0xff pattern:$0x98100000]
    %vm1310 = vcmask 1047556
    %v1311 = vsel %vm1310, %v1309, %v1307
    %1312 = vrot.lane.b32.xlu0 %v1311, 110
    %v1313 = vpop.permute.xlu0 %1312
    %vm1314 = vcmask 15360
    %s1315 = scalar_lea.vmem %s1, 649
    %1316 = vst.msk [vmem:[%s1315] ss:$16 sm:$0x3] %vm1314, %v1313
    %s1317 = scalar_lea.vmem %s1, 649
    %1318 = vst.msk [vmem:[%s1317] ss:$16 sm:$0xc] %vm1314, %v1313
    %s1319 = scalar_lea.vmem %s1, 649
    %1320 = vst.msk [vmem:[%s1319] ss:$16 sm:$0x30] %vm1314, %v1313
    %s1321 = scalar_lea.vmem %s1, 649
    %1322 = vst.msk [vmem:[%s1321] ss:$16 sm:$0xc0] %vm1314, %v1313
    %s1323 = scalar_lea.vmem [#allocation0], 192
    %v1324 = vld.sshfl [vmem:[%s1323] sm:$0xff pattern:$0x99999810]
    %s1325 = scalar_lea.vmem [#allocation0], 208
    %v1326 = vld.sshfl [vmem:[%s1325] sm:$0xff pattern:$0x98100000]
    %vm1327 = vcmask 1047556
    %v1328 = vsel %vm1327, %v1326, %v1324
    %1329 = vrot.lane.b32.xlu0 %v1328, 110
    %v1330 = vpop.permute.xlu0 %1329
    %vm1331 = vcmask 15360
    %s1332 = scalar_lea.vmem %s1, 777
    %1333 = vst.msk [vmem:[%s1332] ss:$16 sm:$0x3] %vm1331, %v1330
    %s1334 = scalar_lea.vmem %s1, 777
    %1335 = vst.msk [vmem:[%s1334] ss:$16 sm:$0xc] %vm1331, %v1330
    %s1336 = scalar_lea.vmem %s1, 777
    %1337 = vst.msk [vmem:[%s1336] ss:$16 sm:$0x30] %vm1331, %v1330
    %s1338 = scalar_lea.vmem %s1, 777
    %1339 = vst.msk [vmem:[%s1338] ss:$16 sm:$0xc0] %vm1331, %v1330
    %v1340 = vld.sshfl [vmem:[#allocation0] sm:$0xff pattern:$0x99999810]
    %s1341 = scalar_lea.vmem [#allocation0], 16
    %v1342 = vld.sshfl [vmem:[%s1341] sm:$0xff pattern:$0x98100000]
    %vm1343 = vcmask 1047556
    %v1344 = vsel %vm1343, %v1342, %v1340
    %1345 = vrot.lane.b32.xlu0 %v1344, 108
    %v1346 = vpop.permute.xlu0 %1345
    %vm1347 = vcmask 15360
    %s1348 = scalar_lea.vmem %s1, 10
    %1349 = vst.msk [vmem:[%s1348] ss:$16 sm:$0x3] %vm1347, %v1346
    %s1350 = scalar_lea.vmem %s1, 10
    %1351 = vst.msk [vmem:[%s1350] ss:$16 sm:$0xc] %vm1347, %v1346
    %s1352 = scalar_lea.vmem %s1, 10
    %1353 = vst.msk [vmem:[%s1352] ss:$16 sm:$0x30] %vm1347, %v1346
    %s1354 = scalar_lea.vmem %s1, 10
    %1355 = vst.msk [vmem:[%s1354] ss:$16 sm:$0xc0] %vm1347, %v1346
    %s1356 = scalar_lea.vmem [#allocation0], 32
    %v1357 = vld.sshfl [vmem:[%s1356] sm:$0xff pattern:$0x99999810]
    %s1358 = scalar_lea.vmem [#allocation0], 48
    %v1359 = vld.sshfl [vmem:[%s1358] sm:$0xff pattern:$0x98100000]
    %vm1360 = vcmask 1047556
    %v1361 = vsel %vm1360, %v1359, %v1357
    %1362 = vrot.lane.b32.xlu0 %v1361, 108
    %v1363 = vpop.permute.xlu0 %1362
    %vm1364 = vcmask 15360
    %s1365 = scalar_lea.vmem %s1, 138
    %1366 = vst.msk [vmem:[%s1365] ss:$16 sm:$0x3] %vm1364, %v1363
    %s1367 = scalar_lea.vmem %s1, 138
    %1368 = vst.msk [vmem:[%s1367] ss:$16 sm:$0xc] %vm1364, %v1363
    %s1369 = scalar_lea.vmem %s1, 138
    %1370 = vst.msk [vmem:[%s1369] ss:$16 sm:$0x30] %vm1364, %v1363
    %s1371 = scalar_lea.vmem %s1, 138
    %1372 = vst.msk [vmem:[%s1371] ss:$16 sm:$0xc0] %vm1364, %v1363
    %s1373 = scalar_lea.vmem [#allocation0], 64
    %v1374 = vld.sshfl [vmem:[%s1373] sm:$0xff pattern:$0x99999810]
    %s1375 = scalar_lea.vmem [#allocation0], 80
    %v1376 = vld.sshfl [vmem:[%s1375] sm:$0xff pattern:$0x98100000]
    %vm1377 = vcmask 1047556
    %v1378 = vsel %vm1377, %v1376, %v1374
    %1379 = vrot.lane.b32.xlu0 %v1378, 108
    %v1380 = vpop.permute.xlu0 %1379
    %vm1381 = vcmask 15360
    %s1382 = scalar_lea.vmem %s1, 266
    %1383 = vst.msk [vmem:[%s1382] ss:$16 sm:$0x3] %vm1381, %v1380
    %s1384 = scalar_lea.vmem %s1, 266
    %1385 = vst.msk [vmem:[%s1384] ss:$16 sm:$0xc] %vm1381, %v1380
    %s1386 = scalar_lea.vmem %s1, 266
    %1387 = vst.msk [vmem:[%s1386] ss:$16 sm:$0x30] %vm1381, %v1380
    %s1388 = scalar_lea.vmem %s1, 266
    %1389 = vst.msk [vmem:[%s1388] ss:$16 sm:$0xc0] %vm1381, %v1380
    %s1390 = scalar_lea.vmem [#allocation0], 96
    %v1391 = vld.sshfl [vmem:[%s1390] sm:$0xff pattern:$0x99999810]
    %s1392 = scalar_lea.vmem [#allocation0], 112
    %v1393 = vld.sshfl [vmem:[%s1392] sm:$0xff pattern:$0x98100000]
    %vm1394 = vcmask 1047556
    %v1395 = vsel %vm1394, %v1393, %v1391
    %1396 = vrot.lane.b32.xlu0 %v1395, 108
    %v1397 = vpop.permute.xlu0 %1396
    %vm1398 = vcmask 15360
    %s1399 = scalar_lea.vmem %s1, 394
    %1400 = vst.msk [vmem:[%s1399] ss:$16 sm:$0x3] %vm1398, %v1397
    %s1401 = scalar_lea.vmem %s1, 394
    %1402 = vst.msk [vmem:[%s1401] ss:$16 sm:$0xc] %vm1398, %v1397
    %s1403 = scalar_lea.vmem %s1, 394
    %1404 = vst.msk [vmem:[%s1403] ss:$16 sm:$0x30] %vm1398, %v1397
    %s1405 = scalar_lea.vmem %s1, 394
    %1406 = vst.msk [vmem:[%s1405] ss:$16 sm:$0xc0] %vm1398, %v1397
    %s1407 = scalar_lea.vmem [#allocation0], 128
    %v1408 = vld.sshfl [vmem:[%s1407] sm:$0xff pattern:$0x99999810]
    %s1409 = scalar_lea.vmem [#allocation0], 144
    %v1410 = vld.sshfl [vmem:[%s1409] sm:$0xff pattern:$0x98100000]
    %vm1411 = vcmask 1047556
    %v1412 = vsel %vm1411, %v1410, %v1408
    %1413 = vrot.lane.b32.xlu0 %v1412, 108
    %v1414 = vpop.permute.xlu0 %1413
    %vm1415 = vcmask 15360
    %s1416 = scalar_lea.vmem %s1, 522
    %1417 = vst.msk [vmem:[%s1416] ss:$16 sm:$0x3] %vm1415, %v1414
    %s1418 = scalar_lea.vmem %s1, 522
    %1419 = vst.msk [vmem:[%s1418] ss:$16 sm:$0xc] %vm1415, %v1414
    %s1420 = scalar_lea.vmem %s1, 522
    %1421 = vst.msk [vmem:[%s1420] ss:$16 sm:$0x30] %vm1415, %v1414
    %s1422 = scalar_lea.vmem %s1, 522
    %1423 = vst.msk [vmem:[%s1422] ss:$16 sm:$0xc0] %vm1415, %v1414
    %s1424 = scalar_lea.vmem [#allocation0], 160
    %v1425 = vld.sshfl [vmem:[%s1424] sm:$0xff pattern:$0x99999810]
    %s1426 = scalar_lea.vmem [#allocation0], 176
    %v1427 = vld.sshfl [vmem:[%s1426] sm:$0xff pattern:$0x98100000]
    %vm1428 = vcmask 1047556
    %v1429 = vsel %vm1428, %v1427, %v1425
    %1430 = vrot.lane.b32.xlu0 %v1429, 108
    %v1431 = vpop.permute.xlu0 %1430
    %vm1432 = vcmask 15360
    %s1433 = scalar_lea.vmem %s1, 650
    %1434 = vst.msk [vmem:[%s1433] ss:$16 sm:$0x3] %vm1432, %v1431
    %s1435 = scalar_lea.vmem %s1, 650
    %1436 = vst.msk [vmem:[%s1435] ss:$16 sm:$0xc] %vm1432, %v1431
    %s1437 = scalar_lea.vmem %s1, 650
    %1438 = vst.msk [vmem:[%s1437] ss:$16 sm:$0x30] %vm1432, %v1431
    %s1439 = scalar_lea.vmem %s1, 650
    %1440 = vst.msk [vmem:[%s1439] ss:$16 sm:$0xc0] %vm1432, %v1431
    %s1441 = scalar_lea.vmem [#allocation0], 192
    %v1442 = vld.sshfl [vmem:[%s1441] sm:$0xff pattern:$0x99999810]
    %s1443 = scalar_lea.vmem [#allocation0], 208
    %v1444 = vld.sshfl [vmem:[%s1443] sm:$0xff pattern:$0x98100000]
    %vm1445 = vcmask 1047556
    %v1446 = vsel %vm1445, %v1444, %v1442
    %1447 = vrot.lane.b32.xlu0 %v1446, 108
    %v1448 = vpop.permute.xlu0 %1447
    %vm1449 = vcmask 15360
    %s1450 = scalar_lea.vmem %s1, 778
    %1451 = vst.msk [vmem:[%s1450] ss:$16 sm:$0x3] %vm1449, %v1448
    %s1452 = scalar_lea.vmem %s1, 778
    %1453 = vst.msk [vmem:[%s1452] ss:$16 sm:$0xc] %vm1449, %v1448
    %s1454 = scalar_lea.vmem %s1, 778
    %1455 = vst.msk [vmem:[%s1454] ss:$16 sm:$0x30] %vm1449, %v1448
    %s1456 = scalar_lea.vmem %s1, 778
    %1457 = vst.msk [vmem:[%s1456] ss:$16 sm:$0xc0] %vm1449, %v1448
    %v1458 = vld.sshfl [vmem:[#allocation0] sm:$0xff pattern:$0x99999810]
    %s1459 = scalar_lea.vmem [#allocation0], 16
    %v1460 = vld.sshfl [vmem:[%s1459] sm:$0xff pattern:$0x98100000]
    %vm1461 = vcmask 1047556
    %v1462 = vsel %vm1461, %v1460, %v1458
    %1463 = vrot.lane.b32.xlu0 %v1462, 106
    %v1464 = vpop.permute.xlu0 %1463
    %vm1465 = vcmask 15360
    %s1466 = scalar_lea.vmem %s1, 11
    %1467 = vst.msk [vmem:[%s1466] ss:$16 sm:$0x3] %vm1465, %v1464
    %s1468 = scalar_lea.vmem %s1, 11
    %1469 = vst.msk [vmem:[%s1468] ss:$16 sm:$0xc] %vm1465, %v1464
    %s1470 = scalar_lea.vmem %s1, 11
    %1471 = vst.msk [vmem:[%s1470] ss:$16 sm:$0x30] %vm1465, %v1464
    %s1472 = scalar_lea.vmem %s1, 11
    %1473 = vst.msk [vmem:[%s1472] ss:$16 sm:$0xc0] %vm1465, %v1464
    %s1474 = scalar_lea.vmem [#allocation0], 32
    %v1475 = vld.sshfl [vmem:[%s1474] sm:$0xff pattern:$0x99999810]
    %s1476 = scalar_lea.vmem [#allocation0], 48
    %v1477 = vld.sshfl [vmem:[%s1476] sm:$0xff pattern:$0x98100000]
    %vm1478 = vcmask 1047556
    %v1479 = vsel %vm1478, %v1477, %v1475
    %1480 = vrot.lane.b32.xlu0 %v1479, 106
    %v1481 = vpop.permute.xlu0 %1480
    %vm1482 = vcmask 15360
    %s1483 = scalar_lea.vmem %s1, 139
    %1484 = vst.msk [vmem:[%s1483] ss:$16 sm:$0x3] %vm1482, %v1481
    %s1485 = scalar_lea.vmem %s1, 139
    %1486 = vst.msk [vmem:[%s1485] ss:$16 sm:$0xc] %vm1482, %v1481
    %s1487 = scalar_lea.vmem %s1, 139
    %1488 = vst.msk [vmem:[%s1487] ss:$16 sm:$0x30] %vm1482, %v1481
    %s1489 = scalar_lea.vmem %s1, 139
    %1490 = vst.msk [vmem:[%s1489] ss:$16 sm:$0xc0] %vm1482, %v1481
    %s1491 = scalar_lea.vmem [#allocation0], 64
    %v1492 = vld.sshfl [vmem:[%s1491] sm:$0xff pattern:$0x99999810]
    %s1493 = scalar_lea.vmem [#allocation0], 80
    %v1494 = vld.sshfl [vmem:[%s1493] sm:$0xff pattern:$0x98100000]
    %vm1495 = vcmask 1047556
    %v1496 = vsel %vm1495, %v1494, %v1492
    %1497 = vrot.lane.b32.xlu0 %v1496, 106
    %v1498 = vpop.permute.xlu0 %1497
    %vm1499 = vcmask 15360
    %s1500 = scalar_lea.vmem %s1, 267
    %1501 = vst.msk [vmem:[%s1500] ss:$16 sm:$0x3] %vm1499, %v1498
    %s1502 = scalar_lea.vmem %s1, 267
    %1503 = vst.msk [vmem:[%s1502] ss:$16 sm:$0xc] %vm1499, %v1498
    %s1504 = scalar_lea.vmem %s1, 267
    %1505 = vst.msk [vmem:[%s1504] ss:$16 sm:$0x30] %vm1499, %v1498
    %s1506 = scalar_lea.vmem %s1, 267
    %1507 = vst.msk [vmem:[%s1506] ss:$16 sm:$0xc0] %vm1499, %v1498
    %s1508 = scalar_lea.vmem [#allocation0], 96
    %v1509 = vld.sshfl [vmem:[%s1508] sm:$0xff pattern:$0x99999810]
    %s1510 = scalar_lea.vmem [#allocation0], 112
    %v1511 = vld.sshfl [vmem:[%s1510] sm:$0xff pattern:$0x98100000]
    %vm1512 = vcmask 1047556
    %v1513 = vsel %vm1512, %v1511, %v1509
    %1514 = vrot.lane.b32.xlu0 %v1513, 106
    %v1515 = vpop.permute.xlu0 %1514
    %vm1516 = vcmask 15360
    %s1517 = scalar_lea.vmem %s1, 395
    %1518 = vst.msk [vmem:[%s1517] ss:$16 sm:$0x3] %vm1516, %v1515
    %s1519 = scalar_lea.vmem %s1, 395
    %1520 = vst.msk [vmem:[%s1519] ss:$16 sm:$0xc] %vm1516, %v1515
    %s1521 = scalar_lea.vmem %s1, 395
    %1522 = vst.msk [vmem:[%s1521] ss:$16 sm:$0x30] %vm1516, %v1515
    %s1523 = scalar_lea.vmem %s1, 395
    %1524 = vst.msk [vmem:[%s1523] ss:$16 sm:$0xc0] %vm1516, %v1515
    %s1525 = scalar_lea.vmem [#allocation0], 128
    %v1526 = vld.sshfl [vmem:[%s1525] sm:$0xff pattern:$0x99999810]
    %s1527 = scalar_lea.vmem [#allocation0], 144
    %v1528 = vld.sshfl [vmem:[%s1527] sm:$0xff pattern:$0x98100000]
    %vm1529 = vcmask 1047556
    %v1530 = vsel %vm1529, %v1528, %v1526
    %1531 = vrot.lane.b32.xlu0 %v1530, 106
    %v1532 = vpop.permute.xlu0 %1531
    %vm1533 = vcmask 15360
    %s1534 = scalar_lea.vmem %s1, 523
    %1535 = vst.msk [vmem:[%s1534] ss:$16 sm:$0x3] %vm1533, %v1532
    %s1536 = scalar_lea.vmem %s1, 523
    %1537 = vst.msk [vmem:[%s1536] ss:$16 sm:$0xc] %vm1533, %v1532
    %s1538 = scalar_lea.vmem %s1, 523
    %1539 = vst.msk [vmem:[%s1538] ss:$16 sm:$0x30] %vm1533, %v1532
    %s1540 = scalar_lea.vmem %s1, 523
    %1541 = vst.msk [vmem:[%s1540] ss:$16 sm:$0xc0] %vm1533, %v1532
    %s1542 = scalar_lea.vmem [#allocation0], 160
    %v1543 = vld.sshfl [vmem:[%s1542] sm:$0xff pattern:$0x99999810]
    %s1544 = scalar_lea.vmem [#allocation0], 176
    %v1545 = vld.sshfl [vmem:[%s1544] sm:$0xff pattern:$0x98100000]
    %vm1546 = vcmask 1047556
    %v1547 = vsel %vm1546, %v1545, %v1543
    %1548 = vrot.lane.b32.xlu0 %v1547, 106
    %v1549 = vpop.permute.xlu0 %1548
    %vm1550 = vcmask 15360
    %s1551 = scalar_lea.vmem %s1, 651
    %1552 = vst.msk [vmem:[%s1551] ss:$16 sm:$0x3] %vm1550, %v1549
    %s1553 = scalar_lea.vmem %s1, 651
    %1554 = vst.msk [vmem:[%s1553] ss:$16 sm:$0xc] %vm1550, %v1549
    %s1555 = scalar_lea.vmem %s1, 651
    %1556 = vst.msk [vmem:[%s1555] ss:$16 sm:$0x30] %vm1550, %v1549
    %s1557 = scalar_lea.vmem %s1, 651
    %1558 = vst.msk [vmem:[%s1557] ss:$16 sm:$0xc0] %vm1550, %v1549
    %s1559 = scalar_lea.vmem [#allocation0], 192
    %v1560 = vld.sshfl [vmem:[%s1559] sm:$0xff pattern:$0x99999810]
    %s1561 = scalar_lea.vmem [#allocation0], 208
    %v1562 = vld.sshfl [vmem:[%s1561] sm:$0xff pattern:$0x98100000]
    %vm1563 = vcmask 1047556
    %v1564 = vsel %vm1563, %v1562, %v1560
    %1565 = vrot.lane.b32.xlu0 %v1564, 106
    %v1566 = vpop.permute.xlu0 %1565
    %vm1567 = vcmask 15360
    %s1568 = scalar_lea.vmem %s1, 779
    %1569 = vst.msk [vmem:[%s1568] ss:$16 sm:$0x3] %vm1567, %v1566
    %s1570 = scalar_lea.vmem %s1, 779
    %1571 = vst.msk [vmem:[%s1570] ss:$16 sm:$0xc] %vm1567, %v1566
    %s1572 = scalar_lea.vmem %s1, 779
    %1573 = vst.msk [vmem:[%s1572] ss:$16 sm:$0x30] %vm1567, %v1566
    %s1574 = scalar_lea.vmem %s1, 779
    %1575 = vst.msk [vmem:[%s1574] ss:$16 sm:$0xc0] %vm1567, %v1566
    %v1576 = vld.sshfl [vmem:[#allocation0] sm:$0xff pattern:$0x99999810]
    %s1577 = scalar_lea.vmem [#allocation0], 16
    %v1578 = vld.sshfl [vmem:[%s1577] sm:$0xff pattern:$0x98100000]
    %vm1579 = vcmask 1047556
    %v1580 = vsel %vm1579, %v1578, %v1576
    %1581 = vrot.lane.b32.xlu0 %v1580, 104
    %v1582 = vpop.permute.xlu0 %1581
    %vm1583 = vcmask 15360
    %s1584 = scalar_lea.vmem %s1, 12
    %1585 = vst.msk [vmem:[%s1584] ss:$16 sm:$0x3] %vm1583, %v1582
    %s1586 = scalar_lea.vmem %s1, 12
    %1587 = vst.msk [vmem:[%s1586] ss:$16 sm:$0xc] %vm1583, %v1582
    %s1588 = scalar_lea.vmem %s1, 12
    %1589 = vst.msk [vmem:[%s1588] ss:$16 sm:$0x30] %vm1583, %v1582
    %s1590 = scalar_lea.vmem %s1, 12
    %1591 = vst.msk [vmem:[%s1590] ss:$16 sm:$0xc0] %vm1583, %v1582
    %s1592 = scalar_lea.vmem [#allocation0], 32
    %v1593 = vld.sshfl [vmem:[%s1592] sm:$0xff pattern:$0x99999810]
    %s1594 = scalar_lea.vmem [#allocation0], 48
    %v1595 = vld.sshfl [vmem:[%s1594] sm:$0xff pattern:$0x98100000]
    %vm1596 = vcmask 1047556
    %v1597 = vsel %vm1596, %v1595, %v1593
    %1598 = vrot.lane.b32.xlu0 %v1597, 104
    %v1599 = vpop.permute.xlu0 %1598
    %vm1600 = vcmask 15360
    %s1601 = scalar_lea.vmem %s1, 140
    %1602 = vst.msk [vmem:[%s1601] ss:$16 sm:$0x3] %vm1600, %v1599
    %s1603 = scalar_lea.vmem %s1, 140
    %1604 = vst.msk [vmem:[%s1603] ss:$16 sm:$0xc] %vm1600, %v1599
    %s1605 = scalar_lea.vmem %s1, 140
    %1606 = vst.msk [vmem:[%s1605] ss:$16 sm:$0x30] %vm1600, %v1599
    %s1607 = scalar_lea.vmem %s1, 140
    %1608 = vst.msk [vmem:[%s1607] ss:$16 sm:$0xc0] %vm1600, %v1599
    %s1609 = scalar_lea.vmem [#allocation0], 64
    %v1610 = vld.sshfl [vmem:[%s1609] sm:$0xff pattern:$0x99999810]
    %s1611 = scalar_lea.vmem [#allocation0], 80
    %v1612 = vld.sshfl [vmem:[%s1611] sm:$0xff pattern:$0x98100000]
    %vm1613 = vcmask 1047556
    %v1614 = vsel %vm1613, %v1612, %v1610
    %1615 = vrot.lane.b32.xlu0 %v1614, 104
    %v1616 = vpop.permute.xlu0 %1615
    %vm1617 = vcmask 15360
    %s1618 = scalar_lea.vmem %s1, 268
    %1619 = vst.msk [vmem:[%s1618] ss:$16 sm:$0x3] %vm1617, %v1616
    %s1620 = scalar_lea.vmem %s1, 268
    %1621 = vst.msk [vmem:[%s1620] ss:$16 sm:$0xc] %vm1617, %v1616
    %s1622 = scalar_lea.vmem %s1, 268
    %1623 = vst.msk [vmem:[%s1622] ss:$16 sm:$0x30] %vm1617, %v1616
    %s1624 = scalar_lea.vmem %s1, 268
    %1625 = vst.msk [vmem:[%s1624] ss:$16 sm:$0xc0] %vm1617, %v1616
    %s1626 = scalar_lea.vmem [#allocation0], 96
    %v1627 = vld.sshfl [vmem:[%s1626] sm:$0xff pattern:$0x99999810]
    %s1628 = scalar_lea.vmem [#allocation0], 112
    %v1629 = vld.sshfl [vmem:[%s1628] sm:$0xff pattern:$0x98100000]
    %vm1630 = vcmask 1047556
    %v1631 = vsel %vm1630, %v1629, %v1627
    %1632 = vrot.lane.b32.xlu0 %v1631, 104
    %v1633 = vpop.permute.xlu0 %1632
    %vm1634 = vcmask 15360
    %s1635 = scalar_lea.vmem %s1, 396
    %1636 = vst.msk [vmem:[%s1635] ss:$16 sm:$0x3] %vm1634, %v1633
    %s1637 = scalar_lea.vmem %s1, 396
    %1638 = vst.msk [vmem:[%s1637] ss:$16 sm:$0xc] %vm1634, %v1633
    %s1639 = scalar_lea.vmem %s1, 396
    %1640 = vst.msk [vmem:[%s1639] ss:$16 sm:$0x30] %vm1634, %v1633
    %s1641 = scalar_lea.vmem %s1, 396
    %1642 = vst.msk [vmem:[%s1641] ss:$16 sm:$0xc0] %vm1634, %v1633
    %s1643 = scalar_lea.vmem [#allocation0], 128
    %v1644 = vld.sshfl [vmem:[%s1643] sm:$0xff pattern:$0x99999810]
    %s1645 = scalar_lea.vmem [#allocation0], 144
    %v1646 = vld.sshfl [vmem:[%s1645] sm:$0xff pattern:$0x98100000]
    %vm1647 = vcmask 1047556
    %v1648 = vsel %vm1647, %v1646, %v1644
    %1649 = vrot.lane.b32.xlu0 %v1648, 104
    %v1650 = vpop.permute.xlu0 %1649
    %vm1651 = vcmask 15360
    %s1652 = scalar_lea.vmem %s1, 524
    %1653 = vst.msk [vmem:[%s1652] ss:$16 sm:$0x3] %vm1651, %v1650
    %s1654 = scalar_lea.vmem %s1, 524
    %1655 = vst.msk [vmem:[%s1654] ss:$16 sm:$0xc] %vm1651, %v1650
    %s1656 = scalar_lea.vmem %s1, 524
    %1657 = vst.msk [vmem:[%s1656] ss:$16 sm:$0x30] %vm1651, %v1650
    %s1658 = scalar_lea.vmem %s1, 524
    %1659 = vst.msk [vmem:[%s1658] ss:$16 sm:$0xc0] %vm1651, %v1650
    %s1660 = scalar_lea.vmem [#allocation0], 160
    %v1661 = vld.sshfl [vmem:[%s1660] sm:$0xff pattern:$0x99999810]
    %s1662 = scalar_lea.vmem [#allocation0], 176
    %v1663 = vld.sshfl [vmem:[%s1662] sm:$0xff pattern:$0x98100000]
    %vm1664 = vcmask 1047556
    %v1665 = vsel %vm1664, %v1663, %v1661
    %1666 = vrot.lane.b32.xlu0 %v1665, 104
    %v1667 = vpop.permute.xlu0 %1666
    %vm1668 = vcmask 15360
    %s1669 = scalar_lea.vmem %s1, 652
    %1670 = vst.msk [vmem:[%s1669] ss:$16 sm:$0x3] %vm1668, %v1667
    %s1671 = scalar_lea.vmem %s1, 652
    %1672 = vst.msk [vmem:[%s1671] ss:$16 sm:$0xc] %vm1668, %v1667
    %s1673 = scalar_lea.vmem %s1, 652
    %1674 = vst.msk [vmem:[%s1673] ss:$16 sm:$0x30] %vm1668, %v1667
    %s1675 = scalar_lea.vmem %s1, 652
    %1676 = vst.msk [vmem:[%s1675] ss:$16 sm:$0xc0] %vm1668, %v1667
    %s1677 = scalar_lea.vmem [#allocation0], 192
    %v1678 = vld.sshfl [vmem:[%s1677] sm:$0xff pattern:$0x99999810]
    %s1679 = scalar_lea.vmem [#allocation0], 208
    %v1680 = vld.sshfl [vmem:[%s1679] sm:$0xff pattern:$0x98100000]
    %vm1681 = vcmask 1047556
    %v1682 = vsel %vm1681, %v1680, %v1678
    %1683 = vrot.lane.b32.xlu0 %v1682, 104
    %v1684 = vpop.permute.xlu0 %1683
    %vm1685 = vcmask 15360
    %s1686 = scalar_lea.vmem %s1, 780
    %1687 = vst.msk [vmem:[%s1686] ss:$16 sm:$0x3] %vm1685, %v1684
    %s1688 = scalar_lea.vmem %s1, 780
    %1689 = vst.msk [vmem:[%s1688] ss:$16 sm:$0xc] %vm1685, %v1684
    %s1690 = scalar_lea.vmem %s1, 780
    %1691 = vst.msk [vmem:[%s1690] ss:$16 sm:$0x30] %vm1685, %v1684
    %s1692 = scalar_lea.vmem %s1, 780
    %1693 = vst.msk [vmem:[%s1692] ss:$16 sm:$0xc0] %vm1685, %v1684
    %v1694 = vld.sshfl [vmem:[#allocation0] sm:$0xff pattern:$0x99999810]
    %s1695 = scalar_lea.vmem [#allocation0], 16
    %v1696 = vld.sshfl [vmem:[%s1695] sm:$0xff pattern:$0x98100000]
    %vm1697 = vcmask 1047556
    %v1698 = vsel %vm1697, %v1696, %v1694
    %1699 = vrot.lane.b32.xlu0 %v1698, 102
    %v1700 = vpop.permute.xlu0 %1699
    %vm1701 = vcmask 15360
    %s1702 = scalar_lea.vmem %s1, 13
    %1703 = vst.msk [vmem:[%s1702] ss:$16 sm:$0x3] %vm1701, %v1700
    %s1704 = scalar_lea.vmem %s1, 13
    %1705 = vst.msk [vmem:[%s1704] ss:$16 sm:$0xc] %vm1701, %v1700
    %s1706 = scalar_lea.vmem %s1, 13
    %1707 = vst.msk [vmem:[%s1706] ss:$16 sm:$0x30] %vm1701, %v1700
    %s1708 = scalar_lea.vmem %s1, 13
    %1709 = vst.msk [vmem:[%s1708] ss:$16 sm:$0xc0] %vm1701, %v1700
    %s1710 = scalar_lea.vmem [#allocation0], 32
    %v1711 = vld.sshfl [vmem:[%s1710] sm:$0xff pattern:$0x99999810]
    %s1712 = scalar_lea.vmem [#allocation0], 48
    %v1713 = vld.sshfl [vmem:[%s1712] sm:$0xff pattern:$0x98100000]
    %vm1714 = vcmask 1047556
    %v1715 = vsel %vm1714, %v1713, %v1711
    %1716 = vrot.lane.b32.xlu0 %v1715, 102
    %v1717 = vpop.permute.xlu0 %1716
    %vm1718 = vcmask 15360
    %s1719 = scalar_lea.vmem %s1, 141
    %1720 = vst.msk [vmem:[%s1719] ss:$16 sm:$0x3] %vm1718, %v1717
    %s1721 = scalar_lea.vmem %s1, 141
    %1722 = vst.msk [vmem:[%s1721] ss:$16 sm:$0xc] %vm1718, %v1717
    %s1723 = scalar_lea.vmem %s1, 141
    %1724 = vst.msk [vmem:[%s1723] ss:$16 sm:$0x30] %vm1718, %v1717
    %s1725 = scalar_lea.vmem %s1, 141
    %1726 = vst.msk [vmem:[%s1725] ss:$16 sm:$0xc0] %vm1718, %v1717
    %s1727 = scalar_lea.vmem [#allocation0], 64
    %v1728 = vld.sshfl [vmem:[%s1727] sm:$0xff pattern:$0x99999810]
    %s1729 = scalar_lea.vmem [#allocation0], 80
    %v1730 = vld.sshfl [vmem:[%s1729] sm:$0xff pattern:$0x98100000]
    %vm1731 = vcmask 1047556
    %v1732 = vsel %vm1731, %v1730, %v1728
    %1733 = vrot.lane.b32.xlu0 %v1732, 102
    %v1734 = vpop.permute.xlu0 %1733
    %vm1735 = vcmask 15360
    %s1736 = scalar_lea.vmem %s1, 269
    %1737 = vst.msk [vmem:[%s1736] ss:$16 sm:$0x3] %vm1735, %v1734
    %s1738 = scalar_lea.vmem %s1, 269
    %1739 = vst.msk [vmem:[%s1738] ss:$16 sm:$0xc] %vm1735, %v1734
    %s1740 = scalar_lea.vmem %s1, 269
    %1741 = vst.msk [vmem:[%s1740] ss:$16 sm:$0x30] %vm1735, %v1734
    %s1742 = scalar_lea.vmem %s1, 269
    %1743 = vst.msk [vmem:[%s1742] ss:$16 sm:$0xc0] %vm1735, %v1734
    %s1744 = scalar_lea.vmem [#allocation0], 96
    %v1745 = vld.sshfl [vmem:[%s1744] sm:$0xff pattern:$0x99999810]
    %s1746 = scalar_lea.vmem [#allocation0], 112
    %v1747 = vld.sshfl [vmem:[%s1746] sm:$0xff pattern:$0x98100000]
    %vm1748 = vcmask 1047556
    %v1749 = vsel %vm1748, %v1747, %v1745
    %1750 = vrot.lane.b32.xlu0 %v1749, 102
    %v1751 = vpop.permute.xlu0 %1750
    %vm1752 = vcmask 15360
    %s1753 = scalar_lea.vmem %s1, 397
    %1754 = vst.msk [vmem:[%s1753] ss:$16 sm:$0x3] %vm1752, %v1751
    %s1755 = scalar_lea.vmem %s1, 397
    %1756 = vst.msk [vmem:[%s1755] ss:$16 sm:$0xc] %vm1752, %v1751
    %s1757 = scalar_lea.vmem %s1, 397
    %1758 = vst.msk [vmem:[%s1757] ss:$16 sm:$0x30] %vm1752, %v1751
    %s1759 = scalar_lea.vmem %s1, 397
    %1760 = vst.msk [vmem:[%s1759] ss:$16 sm:$0xc0] %vm1752, %v1751
    %s1761 = scalar_lea.vmem [#allocation0], 128
    %v1762 = vld.sshfl [vmem:[%s1761] sm:$0xff pattern:$0x99999810]
    %s1763 = scalar_lea.vmem [#allocation0], 144
    %v1764 = vld.sshfl [vmem:[%s1763] sm:$0xff pattern:$0x98100000]
    %vm1765 = vcmask 1047556
    %v1766 = vsel %vm1765, %v1764, %v1762
    %1767 = vrot.lane.b32.xlu0 %v1766, 102
    %v1768 = vpop.permute.xlu0 %1767
    %vm1769 = vcmask 15360
    %s1770 = scalar_lea.vmem %s1, 525
    %1771 = vst.msk [vmem:[%s1770] ss:$16 sm:$0x3] %vm1769, %v1768
    %s1772 = scalar_lea.vmem %s1, 525
    %1773 = vst.msk [vmem:[%s1772] ss:$16 sm:$0xc] %vm1769, %v1768
    %s1774 = scalar_lea.vmem %s1, 525
    %1775 = vst.msk [vmem:[%s1774] ss:$16 sm:$0x30] %vm1769, %v1768
    %s1776 = scalar_lea.vmem %s1, 525
    %1777 = vst.msk [vmem:[%s1776] ss:$16 sm:$0xc0] %vm1769, %v1768
    %s1778 = scalar_lea.vmem [#allocation0], 160
    %v1779 = vld.sshfl [vmem:[%s1778] sm:$0xff pattern:$0x99999810]
    %s1780 = scalar_lea.vmem [#allocation0], 176
    %v1781 = vld.sshfl [vmem:[%s1780] sm:$0xff pattern:$0x98100000]
    %vm1782 = vcmask 1047556
    %v1783 = vsel %vm1782, %v1781, %v1779
    %1784 = vrot.lane.b32.xlu0 %v1783, 102
    %v1785 = vpop.permute.xlu0 %1784
    %vm1786 = vcmask 15360
    %s1787 = scalar_lea.vmem %s1, 653
    %1788 = vst.msk [vmem:[%s1787] ss:$16 sm:$0x3] %vm1786, %v1785
    %s1789 = scalar_lea.vmem %s1, 653
    %1790 = vst.msk [vmem:[%s1789] ss:$16 sm:$0xc] %vm1786, %v1785
    %s1791 = scalar_lea.vmem %s1, 653
    %1792 = vst.msk [vmem:[%s1791] ss:$16 sm:$0x30] %vm1786, %v1785
    %s1793 = scalar_lea.vmem %s1, 653
    %1794 = vst.msk [vmem:[%s1793] ss:$16 sm:$0xc0] %vm1786, %v1785
    %s1795 = scalar_lea.vmem [#allocation0], 192
    %v1796 = vld.sshfl [vmem:[%s1795] sm:$0xff pattern:$0x99999810]
    %s1797 = scalar_lea.vmem [#allocation0], 208
    %v1798 = vld.sshfl [vmem:[%s1797] sm:$0xff pattern:$0x98100000]
    %vm1799 = vcmask 1047556
    %v1800 = vsel %vm1799, %v1798, %v1796
    %1801 = vrot.lane.b32.xlu0 %v1800, 102
    %v1802 = vpop.permute.xlu0 %1801
    %vm1803 = vcmask 15360
    %s1804 = scalar_lea.vmem %s1, 781
    %1805 = vst.msk [vmem:[%s1804] ss:$16 sm:$0x3] %vm1803, %v1802
    %s1806 = scalar_lea.vmem %s1, 781
    %1807 = vst.msk [vmem:[%s1806] ss:$16 sm:$0xc] %vm1803, %v1802
    %s1808 = scalar_lea.vmem %s1, 781
    %1809 = vst.msk [vmem:[%s1808] ss:$16 sm:$0x30] %vm1803, %v1802
    %s1810 = scalar_lea.vmem %s1, 781
    %1811 = vst.msk [vmem:[%s1810] ss:$16 sm:$0xc0] %vm1803, %v1802

// kernel: hybrid_forward.1
$region0: #{hybrid_forward.1}
  #allocation0 [shape = 'u32[]', space=smem, size = 0x4, offset = 0x4, fixed_abs, tag = 'smem constant byte address 0x4 - core index']
  #allocation1 [shape = 'u32[144,128]{1,0:T(1,128)}', space=vmem, size = 0x12000, scoped, tag = 'internal scratch']
  %s0 = inlined_call_operand.vmem [shape: f32[4,4], index: 0, kind: input, shape index: {}]
  %s1 = inlined_call_operand.vmem [shape: f32[4], index: 1, kind: input, shape index: {}]
  %s2 = inlined_call_operand.vmem [shape: f32[4,2,256], index: 2, kind: input, shape index: {}]
  %s3 = inlined_call_operand.vmem [shape: f32[1024,30], index: 3, kind: input, shape index: {}]
  %s4 = inlined_call_operand.vmem [shape: f32[1,30], index: 4, kind: input, shape index: {}]
  %s5 = inlined_call_operand.vmem [shape: f32[30,10], index: 5, kind: input, shape index: {}]
  %s6 = inlined_call_operand.vmem [shape: f32[1,10], index: 6, kind: input, shape index: {}]
  %s7 = inlined_call_operand.hbm [shape: f32[2,10], index: 7, kind: output, shape index: {}]
  %s8 = sld [smem:[#allocation0]]
  $region46: #{hybrid_forward.1} parent=0
    _
  %s10 = ssub.s32 1, %s8
  %s11 = scalar_select 0, %s10, %s8
  $region1: #{hybrid_forward.1} parent=0
    #allocation2 [shape = 'u8[2048]{0}', space=smem, size = 0x800, scoped, tag = 'input window, operand 0, single buffered']
    #allocation3 [shape = 's32[1]{0}', space=sflag, size = 0x4, scoped, tag = 'scoped memory for hybrid_forward.1']
    #allocation4 [shape = 's32[1]{0}', space=sflag, size = 0x4, scoped, tag = 'scoped memory for hybrid_forward.1']
    #allocation5 [shape = 'u8[512]{0}', space=smem, size = 0x200, scoped, tag = 'input window, operand 1, single buffered']
    #allocation6 [shape = 's32[1]{0}', space=sflag, size = 0x4, scoped, tag = 'scoped memory for hybrid_forward.1']
    #allocation7 [shape = 'u8[1024]{0}', space=vmem, size = 0x400, scoped, tag = 'output window, operand 0, single buffered']
    %12 = vsyncpa [#allocation4], 0
    %13 = vsyncpa [#allocation6], 0
    %14 = vsyncpa [#allocation3], 0
    // Predicated region
    $region2: #{hybrid_forward.1} parent=1 // pred_check
      _
    $region3: #{hybrid_forward.1} parent=1 // pred_check_branch
      %16 = sbr.rel (0) target = $region5
    $region4: #{hybrid_forward.1} parent=1 // pred_region
      %s18 = ssub.s32 64, 64
      %19 = vsyncadd [#allocation4], %s18
      %s21 = sshll.u32 %s0, 4
      %s22 = int_to_ptr.vmem [resolvable:$true] %s21
      %24 = dma.vmem_to_smem %s22, 64, [#allocation2], [#allocation4]
    $region5: #{hybrid_forward.1} parent=1 // pred_fallthru
      _
    // Predicated region
    $region6: #{hybrid_forward.1} parent=1 // pred_check
      _
    $region7: #{hybrid_forward.1} parent=1 // pred_check_branch
      %26 = sbr.rel (0) target = $region9
    $region8: #{hybrid_forward.1} parent=1 // pred_region
      %s28 = ssub.s32 16, 16
      %29 = vsyncadd [#allocation6], %s28
      %s31 = sshll.u32 %s1, 4
      %s32 = int_to_ptr.vmem [resolvable:$true] %s31
      %34 = dma.vmem_to_smem %s32, 16, [#allocation5], [#allocation6]
    $region9: #{hybrid_forward.1} parent=1 // pred_fallthru
      _
    // Predicated region
    $region10: #{hybrid_forward.1} parent=1 // pred_check
      _
    $region11: #{hybrid_forward.1} parent=1 // pred_check_branch
      %36 = sbr.rel (0) target = $region13
    $region12: #{hybrid_forward.1} parent=1 // pred_region
      _
    $region13: #{hybrid_forward.1} parent=1 // pred_fallthru
      _
    // Predicated region
    $region14: #{hybrid_forward.1} parent=1 // pred_check
      _
    $region15: #{hybrid_forward.1} parent=1 // pred_check_branch
      %38 = sbr.rel (0) target = $region17
    $region16: #{hybrid_forward.1} parent=1 // pred_region
      _
    $region17: #{hybrid_forward.1} parent=1 // pred_fallthru
      _
    // Predicated region
    $region18: #{hybrid_forward.1} parent=1 // pred_check
      _
    $region19: #{hybrid_forward.1} parent=1 // pred_check_branch
      %40 = sbr.rel (0) target = $region21
    $region20: #{hybrid_forward.1} parent=1 // pred_region
      _
    $region21: #{hybrid_forward.1} parent=1 // pred_fallthru
      _
    // Predicated region
    $region22: #{hybrid_forward.1} parent=1 // pred_check
      _
    $region23: #{hybrid_forward.1} parent=1 // pred_check_branch
      %42 = sbr.rel (0) target = $region25
    $region24: #{hybrid_forward.1} parent=1 // pred_region
      _
    $region25: #{hybrid_forward.1} parent=1 // pred_fallthru
      _
    // Predicated region
    $region26: #{hybrid_forward.1} parent=1 // pred_check
      _
    $region27: #{hybrid_forward.1} parent=1 // pred_check_branch
      %44 = sbr.rel (0) target = $region29
    $region28: #{hybrid_forward.1} parent=1 // pred_region
      _
    $region29: #{hybrid_forward.1} parent=1 // pred_fallthru
      _
    // Predicated region
    $region30: #{hybrid_forward.1} parent=1 // pred_check
      _
    $region31: #{hybrid_forward.1} parent=1 // pred_check_branch
      %46 = sbr.rel (0) target = $region33
    $region32: #{hybrid_forward.1} parent=1 // pred_region
      %47 = dma.done [#allocation4], 64
    $region33: #{hybrid_forward.1} parent=1 // pred_fallthru
      _
    // Predicated region
    $region34: #{hybrid_forward.1} parent=1 // pred_check
      _
    $region35: #{hybrid_forward.1} parent=1 // pred_check_branch
      %49 = sbr.rel (0) target = $region37
    $region36: #{hybrid_forward.1} parent=1 // pred_region
      %50 = dma.done [#allocation6], 16
    $region37: #{hybrid_forward.1} parent=1 // pred_fallthru
      _
    %51 = sfence
    %v52 = vld [vmem:[%s2] sm:$0xf]
    %v53 = vld [vmem:[%s2 + $0x4] sm:$0xf]
    %v54 = vld [vmem:[%s2 + $0x8] sm:$0xf]
    %v55 = vld [vmem:[%s2 + $0xc] sm:$0xf]
    %s56 = sld [smem:[#allocation2]]
    %v57 = vstv %s56
    %v58 = vmul.f32 %v57, %v52
    %s59 = sld [smem:[#allocation2 + $0x1]]
    %v60 = vstv %s59
    %v61 = vmul.f32 %v60, %v53
    %v62 = vadd.f32 %v58, %v61
    %s63 = sld [smem:[#allocation2 + $0x2]]
    %v64 = vstv %s63
    %v65 = vmul.f32 %v64, %v54
    %v66 = vadd.f32 %v62, %v65
    %s67 = sld [smem:[#allocation2 + $0x3]]
    %v68 = vstv %s67
    %v69 = vmul.f32 %v68, %v55
    %v70 = vadd.f32 %v66, %v69
    %s71 = sld [smem:[#allocation5]]
    %v72 = vstv %s71
    %v73 = vadd.f32 %v70, %v72
    %v74 = vmax.f32 %v73, 0.0
    %s75 = sld [smem:[#allocation2 + $0x80]]
    %v76 = vstv %s75
    %v77 = vmul.f32 %v76, %v52
    %s78 = sld [smem:[#allocation2 + $0x81]]
    %v79 = vstv %s78
    %v80 = vmul.f32 %v79, %v53
    %v81 = vadd.f32 %v77, %v80
    %s82 = sld [smem:[#allocation2 + $0x82]]
    %v83 = vstv %s82
    %v84 = vmul.f32 %v83, %v54
    %v85 = vadd.f32 %v81, %v84
    %s86 = sld [smem:[#allocation2 + $0x83]]
    %v87 = vstv %s86
    %v88 = vmul.f32 %v87, %v55
    %v89 = vadd.f32 %v85, %v88
    %s90 = sld [smem:[#allocation5 + $0x1]]
    %v91 = vstv %s90
    %v92 = vadd.f32 %v89, %v91
    %v93 = vmax.f32 %v92, 0.0
    %s94 = sld [smem:[#allocation2 + $0x100]]
    %v95 = vstv %s94
    %v96 = vmul.f32 %v95, %v52
    %s97 = sld [smem:[#allocation2 + $0x101]]
    %v98 = vstv %s97
    %v99 = vmul.f32 %v98, %v53
    %v100 = vadd.f32 %v96, %v99
    %s101 = sld [smem:[#allocation2 + $0x102]]
    %v102 = vstv %s101
    %v103 = vmul.f32 %v102, %v54
    %v104 = vadd.f32 %v100, %v103
    %s105 = sld [smem:[#allocation2 + $0x103]]
    %v106 = vstv %s105
    %v107 = vmul.f32 %v106, %v55
    %v108 = vadd.f32 %v104, %v107
    %s109 = sld [smem:[#allocation5 + $0x2]]
    %v110 = vstv %s109
    %v111 = vadd.f32 %v108, %v110
    %v112 = vmax.f32 %v111, 0.0
    %s113 = sld [smem:[#allocation2 + $0x180]]
    %v114 = vstv %s113
    %v115 = vmul.f32 %v114, %v52
    %s116 = sld [smem:[#allocation2 + $0x181]]
    %v117 = vstv %s116
    %v118 = vmul.f32 %v117, %v53
    %v119 = vadd.f32 %v115, %v118
    %s120 = sld [smem:[#allocation2 + $0x182]]
    %v121 = vstv %s120
    %v122 = vmul.f32 %v121, %v54
    %v123 = vadd.f32 %v119, %v122
    %s124 = sld [smem:[#allocation2 + $0x183]]
    %v125 = vstv %s124
    %v126 = vmul.f32 %v125, %v55
    %v127 = vadd.f32 %v123, %v126
    %s128 = sld [smem:[#allocation5 + $0x3]]
    %v129 = vstv %s128
    %v130 = vadd.f32 %v127, %v129
    %v131 = vmax.f32 %v130, 0.0
    %v134 = vunpack.c.l.s4 1983009808
    %v135 = vunpack.c.0.s8 %v134
    %v136 = vlaneseq
    %v137 = vshrl.u32 %v136, 7
    %v138 = vsub.s32 %v135, %v137
    %v139 = vrot.slane %v74, %v138
    %v140 = vcombine.high %v139, %v139
    %v145 = vunpack.c.l.s4 1983009808
    %v146 = vunpack.c.0.s8 %v145
    %v147 = vlaneseq
    %v148 = vshrl.u32 %v147, 7
    %v149 = vsub.s32 %v146, %v148
    %v150 = vrot.slane %v93, %v149
    %v151 = vcombine.high %v150, %v150
    %v156 = vunpack.c.l.s4 1983009808
    %v157 = vunpack.c.0.s8 %v156
    %v158 = vlaneseq
    %v159 = vshrl.u32 %v158, 7
    %v160 = vsub.s32 %v157, %v159
    %v161 = vrot.slane %v112, %v160
    %v162 = vcombine.high %v161, %v161
    %v167 = vunpack.c.l.s4 1983009808
    %v168 = vunpack.c.0.s8 %v167
    %v169 = vlaneseq
    %v170 = vshrl.u32 %v169, 7
    %v171 = vsub.s32 %v168, %v170
    %v172 = vrot.slane %v131, %v171
    %v173 = vcombine.high %v172, %v172
    %v176 = vld [vmem:[%s3] sm:$0xff]
    %v177 = vld [vmem:[%s3 + $0x8] sm:$0xff]
    %v178 = vld [vmem:[%s3 + $0x10] sm:$0xff]
    %v179 = vld [vmem:[%s3 + $0x18] sm:$0xff]
    %v180 = vld [vmem:[%s3 + $0x20] sm:$0xff]
    %v181 = vld [vmem:[%s3 + $0x28] sm:$0xff]
    %v182 = vld [vmem:[%s3 + $0x30] sm:$0xff]
    %v183 = vld [vmem:[%s3 + $0x38] sm:$0xff]
    %v184 = vld [vmem:[%s3 + $0x40] sm:$0xff]
    %v185 = vld [vmem:[%s3 + $0x48] sm:$0xff]
    %v186 = vld [vmem:[%s3 + $0x50] sm:$0xff]
    %v187 = vld [vmem:[%s3 + $0x58] sm:$0xff]
    %v188 = vld [vmem:[%s3 + $0x60] sm:$0xff]
    %v189 = vld [vmem:[%s3 + $0x68] sm:$0xff]
    %v190 = vld [vmem:[%s3 + $0x70] sm:$0xff]
    %v191 = vld [vmem:[%s3 + $0x78] sm:$0xff]
    %v192 = vld [vmem:[%s3 + $0x80] sm:$0xff]
    %v193 = vld [vmem:[%s3 + $0x88] sm:$0xff]
    %v194 = vld [vmem:[%s3 + $0x90] sm:$0xff]
    %v195 = vld [vmem:[%s3 + $0x98] sm:$0xff]
    %v196 = vld [vmem:[%s3 + $0xa0] sm:$0xff]
    %v197 = vld [vmem:[%s3 + $0xa8] sm:$0xff]
    %v198 = vld [vmem:[%s3 + $0xb0] sm:$0xff]
    %v199 = vld [vmem:[%s3 + $0xb8] sm:$0xff]
    %v200 = vld [vmem:[%s3 + $0xc0] sm:$0xff]
    %v201 = vld [vmem:[%s3 + $0xc8] sm:$0xff]
    %v202 = vld [vmem:[%s3 + $0xd0] sm:$0xff]
    %v203 = vld [vmem:[%s3 + $0xd8] sm:$0xff]
    %v204 = vld [vmem:[%s3 + $0xe0] sm:$0xff]
    %v205 = vld [vmem:[%s3 + $0xe8] sm:$0xff]
    %v206 = vld [vmem:[%s3 + $0xf0] sm:$0xff]
    %v207 = vld [vmem:[%s3 + $0xf8] sm:$0xff]
    %v208 = vld [vmem:[%s3 + $0x100] sm:$0xff]
    %v209 = vld [vmem:[%s3 + $0x108] sm:$0xff]
    %v210 = vld [vmem:[%s3 + $0x110] sm:$0xff]
    %v211 = vld [vmem:[%s3 + $0x118] sm:$0xff]
    %v212 = vld [vmem:[%s3 + $0x120] sm:$0xff]
    %v213 = vld [vmem:[%s3 + $0x128] sm:$0xff]
    %v214 = vld [vmem:[%s3 + $0x130] sm:$0xff]
    %v215 = vld [vmem:[%s3 + $0x138] sm:$0xff]
    %v216 = vld [vmem:[%s3 + $0x140] sm:$0xff]
    %v217 = vld [vmem:[%s3 + $0x148] sm:$0xff]
    %v218 = vld [vmem:[%s3 + $0x150] sm:$0xff]
    %v219 = vld [vmem:[%s3 + $0x158] sm:$0xff]
    %v220 = vld [vmem:[%s3 + $0x160] sm:$0xff]
    %v221 = vld [vmem:[%s3 + $0x168] sm:$0xff]
    %v222 = vld [vmem:[%s3 + $0x170] sm:$0xff]
    %v223 = vld [vmem:[%s3 + $0x178] sm:$0xff]
    %v224 = vld [vmem:[%s3 + $0x180] sm:$0xff]
    %v225 = vld [vmem:[%s3 + $0x188] sm:$0xff]
    %v226 = vld [vmem:[%s3 + $0x190] sm:$0xff]
    %v227 = vld [vmem:[%s3 + $0x198] sm:$0xff]
    %v228 = vld [vmem:[%s3 + $0x1a0] sm:$0xff]
    %v229 = vld [vmem:[%s3 + $0x1a8] sm:$0xff]
    %v230 = vld [vmem:[%s3 + $0x1b0] sm:$0xff]
    %v231 = vld [vmem:[%s3 + $0x1b8] sm:$0xff]
    %v232 = vld [vmem:[%s3 + $0x1c0] sm:$0xff]
    %v233 = vld [vmem:[%s3 + $0x1c8] sm:$0xff]
    %v234 = vld [vmem:[%s3 + $0x1d0] sm:$0xff]
    %v235 = vld [vmem:[%s3 + $0x1d8] sm:$0xff]
    %v236 = vld [vmem:[%s3 + $0x1e0] sm:$0xff]
    %v237 = vld [vmem:[%s3 + $0x1e8] sm:$0xff]
    %v238 = vld [vmem:[%s3 + $0x1f0] sm:$0xff]
    %v239 = vld [vmem:[%s3 + $0x1f8] sm:$0xff]
    %v240 = vld [vmem:[%s3 + $0x200] sm:$0xff]
    %v241 = vld [vmem:[%s3 + $0x208] sm:$0xff]
    %v242 = vld [vmem:[%s3 + $0x210] sm:$0xff]
    %v243 = vld [vmem:[%s3 + $0x218] sm:$0xff]
    %v244 = vld [vmem:[%s3 + $0x220] sm:$0xff]
    %v245 = vld [vmem:[%s3 + $0x228] sm:$0xff]
    %v246 = vld [vmem:[%s3 + $0x230] sm:$0xff]
    %v247 = vld [vmem:[%s3 + $0x238] sm:$0xff]
    %v248 = vld [vmem:[%s3 + $0x240] sm:$0xff]
    %v249 = vld [vmem:[%s3 + $0x248] sm:$0xff]
    %v250 = vld [vmem:[%s3 + $0x250] sm:$0xff]
    %v251 = vld [vmem:[%s3 + $0x258] sm:$0xff]
    %v252 = vld [vmem:[%s3 + $0x260] sm:$0xff]
    %v253 = vld [vmem:[%s3 + $0x268] sm:$0xff]
    %v254 = vld [vmem:[%s3 + $0x270] sm:$0xff]
    %v255 = vld [vmem:[%s3 + $0x278] sm:$0xff]
    %v256 = vld [vmem:[%s3 + $0x280] sm:$0xff]
    %v257 = vld [vmem:[%s3 + $0x288] sm:$0xff]
    %v258 = vld [vmem:[%s3 + $0x290] sm:$0xff]
    %v259 = vld [vmem:[%s3 + $0x298] sm:$0xff]
    %v260 = vld [vmem:[%s3 + $0x2a0] sm:$0xff]
    %v261 = vld [vmem:[%s3 + $0x2a8] sm:$0xff]
    %v262 = vld [vmem:[%s3 + $0x2b0] sm:$0xff]
    %v263 = vld [vmem:[%s3 + $0x2b8] sm:$0xff]
    %v264 = vld [vmem:[%s3 + $0x2c0] sm:$0xff]
    %v265 = vld [vmem:[%s3 + $0x2c8] sm:$0xff]
    %v266 = vld [vmem:[%s3 + $0x2d0] sm:$0xff]
    %v267 = vld [vmem:[%s3 + $0x2d8] sm:$0xff]
    %v268 = vld [vmem:[%s3 + $0x2e0] sm:$0xff]
    %v269 = vld [vmem:[%s3 + $0x2e8] sm:$0xff]
    %v270 = vld [vmem:[%s3 + $0x2f0] sm:$0xff]
    %v271 = vld [vmem:[%s3 + $0x2f8] sm:$0xff]
    %v272 = vld [vmem:[%s3 + $0x300] sm:$0xff]
    %v273 = vld [vmem:[%s3 + $0x308] sm:$0xff]
    %v274 = vld [vmem:[%s3 + $0x310] sm:$0xff]
    %v275 = vld [vmem:[%s3 + $0x318] sm:$0xff]
    %v276 = vld [vmem:[%s3 + $0x320] sm:$0xff]
    %v277 = vld [vmem:[%s3 + $0x328] sm:$0xff]
    %v278 = vld [vmem:[%s3 + $0x330] sm:$0xff]
    %v279 = vld [vmem:[%s3 + $0x338] sm:$0xff]
    %v280 = vld [vmem:[%s3 + $0x340] sm:$0xff]
    %v281 = vld [vmem:[%s3 + $0x348] sm:$0xff]
    %v282 = vld [vmem:[%s3 + $0x350] sm:$0xff]
    %v283 = vld [vmem:[%s3 + $0x358] sm:$0xff]
    %v284 = vld [vmem:[%s3 + $0x360] sm:$0xff]
    %v285 = vld [vmem:[%s3 + $0x368] sm:$0xff]
    %v286 = vld [vmem:[%s3 + $0x370] sm:$0xff]
    %v287 = vld [vmem:[%s3 + $0x378] sm:$0xff]
    %v288 = vld [vmem:[%s3 + $0x380] sm:$0xff]
    %v289 = vld [vmem:[%s3 + $0x388] sm:$0xff]
    %v290 = vld [vmem:[%s3 + $0x390] sm:$0xff]
    %v291 = vld [vmem:[%s3 + $0x398] sm:$0xff]
    %v292 = vld [vmem:[%s3 + $0x3a0] sm:$0xff]
    %v293 = vld [vmem:[%s3 + $0x3a8] sm:$0xff]
    %v294 = vld [vmem:[%s3 + $0x3b0] sm:$0xff]
    %v295 = vld [vmem:[%s3 + $0x3b8] sm:$0xff]
    %v296 = vld [vmem:[%s3 + $0x3c0] sm:$0xff]
    %v297 = vld [vmem:[%s3 + $0x3c8] sm:$0xff]
    %v298 = vld [vmem:[%s3 + $0x3d0] sm:$0xff]
    %v299 = vld [vmem:[%s3 + $0x3d8] sm:$0xff]
    %v300 = vld [vmem:[%s3 + $0x3e0] sm:$0xff]
    %v301 = vld [vmem:[%s3 + $0x3e8] sm:$0xff]
    %v302 = vld [vmem:[%s3 + $0x3f0] sm:$0xff]
    %v303 = vld [vmem:[%s3 + $0x3f8] sm:$0xff]
    %v304 = vld [vmem:[%s4] sm:$0x1]
    %v306 = vlaneseq
    %v307 = vshrl.u32 %v306, 7
    %v308 = vsub.s32 0, %v307
    %v309 = vrot.slane %v304, %v308
    %311 = vmatprep.subr.mxu0 0.0
    %312 = vmatpush1.msra.mxu0 %v176
    %313 = vmatprep.subr.mxu0 0.0
    %314 = vmatpush1.msra.mxu0 %v177
    %315 = vmatprep.subr.mxu0 0.0
    %316 = vmatpush1.msra.mxu0 %v178
    %317 = vmatprep.subr.mxu0 0.0
    %318 = vmatpush1.msra.mxu0 %v179
    %319 = vmatprep.subr.mxu0 0.0
    %320 = vmatpush1.msra.mxu0 %v180
    %321 = vmatprep.subr.mxu0 0.0
    %322 = vmatpush1.msra.mxu0 %v181
    %323 = vmatprep.subr.mxu0 0.0
    %324 = vmatpush1.msra.mxu0 %v182
    %325 = vmatprep.subr.mxu0 0.0
    %326 = vmatpush1.msra.mxu0 %v183
    %327 = vmatprep.subr.mxu0 0.0
    %328 = vmatpush1.msra.mxu0 %v184
    %329 = vmatprep.subr.mxu0 0.0
    %330 = vmatpush1.msra.mxu0 %v185
    %331 = vmatprep.subr.mxu0 0.0
    %332 = vmatpush1.msra.mxu0 %v186
    %333 = vmatprep.subr.mxu0 0.0
    %334 = vmatpush1.msra.mxu0 %v187
    %335 = vmatprep.subr.mxu0 0.0
    %336 = vmatpush1.msra.mxu0 %v188
    %337 = vmatprep.subr.mxu0 0.0
    %338 = vmatpush1.msra.mxu0 %v189
    %339 = vmatprep.subr.mxu0 0.0
    %340 = vmatpush1.msra.mxu0 %v190
    %341 = vmatprep.subr.mxu0 0.0
    %342 = vmatpush1.msra.mxu0 %v191
    %343 = vmatprep.subr.mxu0 0.0
    %344 = vmatpush1.msra.mxu0 %v192
    %345 = vmatprep.subr.mxu0 0.0
    %346 = vmatpush1.msra.mxu0 %v193
    %347 = vmatprep.subr.mxu0 0.0
    %348 = vmatpush1.msra.mxu0 %v194
    %349 = vmatprep.subr.mxu0 0.0
    %350 = vmatpush1.msra.mxu0 %v195
    %351 = vmatprep.subr.mxu0 0.0
    %352 = vmatpush1.msra.mxu0 %v196
    %353 = vmatprep.subr.mxu0 0.0
    %354 = vmatpush1.msra.mxu0 %v197
    %355 = vmatprep.subr.mxu0 0.0
    %356 = vmatpush1.msra.mxu0 %v198
    %357 = vmatprep.subr.mxu0 0.0
    %358 = vmatpush1.msra.mxu0 %v199
    %359 = vmatprep.subr.mxu0 0.0
    %360 = vmatpush1.msra.mxu0 %v200
    %361 = vmatprep.subr.mxu0 0.0
    %362 = vmatpush1.msra.mxu0 %v201
    %363 = vmatprep.subr.mxu0 0.0
    %364 = vmatpush1.msra.mxu0 %v202
    %365 = vmatprep.subr.mxu0 0.0
    %366 = vmatpush1.msra.mxu0 %v203
    %367 = vmatprep.subr.mxu0 0.0
    %368 = vmatpush1.msra.mxu0 %v204
    %369 = vmatprep.subr.mxu0 0.0
    %370 = vmatpush1.msra.mxu0 %v205
    %371 = vmatprep.subr.mxu0 0.0
    %372 = vmatpush1.msra.mxu0 %v206
    %373 = vmatprep.subr.mxu0 0.0
    %374 = vmatpush1.msra.mxu0 %v207
    %375 = vmatprep.mubr.f32.mxu0 %v140
    %376 = vmatmul.mubr.f32.gmra.mrb[0].mxu0 %v139
    %v377 = vpop.f32.mrb[0].mxu0
    %v378 = vadd.f32 %v309, %v377
    %v379 = vpop.f32.mrb[0].mxu0
    %380 = vdwg.mxu0
    %381 = vmatprep.subr.mxu0 0.0
    %382 = vmatpush1.msra.mxu0 %v208
    %383 = vmatprep.subr.mxu0 0.0
    %384 = vmatpush1.msra.mxu0 %v209
    %385 = vmatprep.subr.mxu0 0.0
    %386 = vmatpush1.msra.mxu0 %v210
    %387 = vmatprep.subr.mxu0 0.0
    %388 = vmatpush1.msra.mxu0 %v211
    %389 = vmatprep.subr.mxu0 0.0
    %390 = vmatpush1.msra.mxu0 %v212
    %391 = vmatprep.subr.mxu0 0.0
    %392 = vmatpush1.msra.mxu0 %v213
    %393 = vmatprep.subr.mxu0 0.0
    %394 = vmatpush1.msra.mxu0 %v214
    %395 = vmatprep.subr.mxu0 0.0
    %396 = vmatpush1.msra.mxu0 %v215
    %397 = vmatprep.subr.mxu0 0.0
    %398 = vmatpush1.msra.mxu0 %v216
    %399 = vmatprep.subr.mxu0 0.0
    %400 = vmatpush1.msra.mxu0 %v217
    %401 = vmatprep.subr.mxu0 0.0
    %402 = vmatpush1.msra.mxu0 %v218
    %403 = vmatprep.subr.mxu0 0.0
    %404 = vmatpush1.msra.mxu0 %v219
    %405 = vmatprep.subr.mxu0 0.0
    %406 = vmatpush1.msra.mxu0 %v220
    %407 = vmatprep.subr.mxu0 0.0
    %408 = vmatpush1.msra.mxu0 %v221
    %409 = vmatprep.subr.mxu0 0.0
    %410 = vmatpush1.msra.mxu0 %v222
    %411 = vmatprep.subr.mxu0 0.0
    %412 = vmatpush1.msra.mxu0 %v223
    %413 = vmatprep.subr.mxu0 0.0
    %414 = vmatpush1.msra.mxu0 %v224
    %415 = vmatprep.subr.mxu0 0.0
    %416 = vmatpush1.msra.mxu0 %v225
    %417 = vmatprep.subr.mxu0 0.0
    %418 = vmatpush1.msra.mxu0 %v226
    %419 = vmatprep.subr.mxu0 0.0
    %420 = vmatpush1.msra.mxu0 %v227
    %421 = vmatprep.subr.mxu0 0.0
    %422 = vmatpush1.msra.mxu0 %v228
    %423 = vmatprep.subr.mxu0 0.0
    %424 = vmatpush1.msra.mxu0 %v229
    %425 = vmatprep.subr.mxu0 0.0
    %426 = vmatpush1.msra.mxu0 %v230
    %427 = vmatprep.subr.mxu0 0.0
    %428 = vmatpush1.msra.mxu0 %v231
    %429 = vmatprep.subr.mxu0 0.0
    %430 = vmatpush1.msra.mxu0 %v232
    %431 = vmatprep.subr.mxu0 0.0
    %432 = vmatpush1.msra.mxu0 %v233
    %433 = vmatprep.subr.mxu0 0.0
    %434 = vmatpush1.msra.mxu0 %v234
    %435 = vmatprep.subr.mxu0 0.0
    %436 = vmatpush1.msra.mxu0 %v235
    %437 = vmatprep.subr.mxu0 0.0
    %438 = vmatpush1.msra.mxu0 %v236
    %439 = vmatprep.subr.mxu0 0.0
    %440 = vmatpush1.msra.mxu0 %v237
    %441 = vmatprep.subr.mxu0 0.0
    %442 = vmatpush1.msra.mxu0 %v238
    %443 = vmatprep.subr.mxu0 0.0
    %444 = vmatpush1.msra.mxu0 %v239
    %445 = vmatprep.mubr.f32.mxu0 %v151
    %446 = vmatmul.mubr.f32.gmra.mrb[0].mxu0 %v150
    %v447 = vpop.f32.mrb[0].mxu0
    %v448 = vadd.f32 %v378, %v447
    %v449 = vpop.f32.mrb[0].mxu0
    %450 = vdwg.mxu0
    %451 = vmatprep.subr.mxu0 0.0
    %452 = vmatpush1.msra.mxu0 %v240
    %453 = vmatprep.subr.mxu0 0.0
    %454 = vmatpush1.msra.mxu0 %v241
    %455 = vmatprep.subr.mxu0 0.0
    %456 = vmatpush1.msra.mxu0 %v242
    %457 = vmatprep.subr.mxu0 0.0
    %458 = vmatpush1.msra.mxu0 %v243
    %459 = vmatprep.subr.mxu0 0.0
    %460 = vmatpush1.msra.mxu0 %v244
    %461 = vmatprep.subr.mxu0 0.0
    %462 = vmatpush1.msra.mxu0 %v245
    %463 = vmatprep.subr.mxu0 0.0
    %464 = vmatpush1.msra.mxu0 %v246
    %465 = vmatprep.subr.mxu0 0.0
    %466 = vmatpush1.msra.mxu0 %v247
    %467 = vmatprep.subr.mxu0 0.0
    %468 = vmatpush1.msra.mxu0 %v248
    %469 = vmatprep.subr.mxu0 0.0
    %470 = vmatpush1.msra.mxu0 %v249
    %471 = vmatprep.subr.mxu0 0.0
    %472 = vmatpush1.msra.mxu0 %v250
    %473 = vmatprep.subr.mxu0 0.0
    %474 = vmatpush1.msra.mxu0 %v251
    %475 = vmatprep.subr.mxu0 0.0
    %476 = vmatpush1.msra.mxu0 %v252
    %477 = vmatprep.subr.mxu0 0.0
    %478 = vmatpush1.msra.mxu0 %v253
    %479 = vmatprep.subr.mxu0 0.0
    %480 = vmatpush1.msra.mxu0 %v254
    %481 = vmatprep.subr.mxu0 0.0
    %482 = vmatpush1.msra.mxu0 %v255
    %483 = vmatprep.subr.mxu0 0.0
    %484 = vmatpush1.msra.mxu0 %v256
    %485 = vmatprep.subr.mxu0 0.0
    %486 = vmatpush1.msra.mxu0 %v257
    %487 = vmatprep.subr.mxu0 0.0
    %488 = vmatpush1.msra.mxu0 %v258
    %489 = vmatprep.subr.mxu0 0.0
    %490 = vmatpush1.msra.mxu0 %v259
    %491 = vmatprep.subr.mxu0 0.0
    %492 = vmatpush1.msra.mxu0 %v260
    %493 = vmatprep.subr.mxu0 0.0
    %494 = vmatpush1.msra.mxu0 %v261
    %495 = vmatprep.subr.mxu0 0.0
    %496 = vmatpush1.msra.mxu0 %v262
    %497 = vmatprep.subr.mxu0 0.0
    %498 = vmatpush1.msra.mxu0 %v263
    %499 = vmatprep.subr.mxu0 0.0
    %500 = vmatpush1.msra.mxu0 %v264
    %501 = vmatprep.subr.mxu0 0.0
    %502 = vmatpush1.msra.mxu0 %v265
    %503 = vmatprep.subr.mxu0 0.0
    %504 = vmatpush1.msra.mxu0 %v266
    %505 = vmatprep.subr.mxu0 0.0
    %506 = vmatpush1.msra.mxu0 %v267
    %507 = vmatprep.subr.mxu0 0.0
    %508 = vmatpush1.msra.mxu0 %v268
    %509 = vmatprep.subr.mxu0 0.0
    %510 = vmatpush1.msra.mxu0 %v269
    %511 = vmatprep.subr.mxu0 0.0
    %512 = vmatpush1.msra.mxu0 %v270
    %513 = vmatprep.subr.mxu0 0.0
    %514 = vmatpush1.msra.mxu0 %v271
    %515 = vmatprep.mubr.f32.mxu0 %v162
    %516 = vmatmul.mubr.f32.gmra.mrb[0].mxu0 %v161
    %v517 = vpop.f32.mrb[0].mxu0
    %v518 = vadd.f32 %v448, %v517
    %v519 = vpop.f32.mrb[0].mxu0
    %520 = vdwg.mxu0
    %521 = vmatprep.subr.mxu0 0.0
    %522 = vmatpush1.msra.mxu0 %v272
    %523 = vmatprep.subr.mxu0 0.0
    %524 = vmatpush1.msra.mxu0 %v273
    %525 = vmatprep.subr.mxu0 0.0
    %526 = vmatpush1.msra.mxu0 %v274
    %527 = vmatprep.subr.mxu0 0.0
    %528 = vmatpush1.msra.mxu0 %v275
    %529 = vmatprep.subr.mxu0 0.0
    %530 = vmatpush1.msra.mxu0 %v276
    %531 = vmatprep.subr.mxu0 0.0
    %532 = vmatpush1.msra.mxu0 %v277
    %533 = vmatprep.subr.mxu0 0.0
    %534 = vmatpush1.msra.mxu0 %v278
    %535 = vmatprep.subr.mxu0 0.0
    %536 = vmatpush1.msra.mxu0 %v279
    %537 = vmatprep.subr.mxu0 0.0
    %538 = vmatpush1.msra.mxu0 %v280
    %539 = vmatprep.subr.mxu0 0.0
    %540 = vmatpush1.msra.mxu0 %v281
    %541 = vmatprep.subr.mxu0 0.0
    %542 = vmatpush1.msra.mxu0 %v282
    %543 = vmatprep.subr.mxu0 0.0
    %544 = vmatpush1.msra.mxu0 %v283
    %545 = vmatprep.subr.mxu0 0.0
    %546 = vmatpush1.msra.mxu0 %v284
    %547 = vmatprep.subr.mxu0 0.0
    %548 = vmatpush1.msra.mxu0 %v285
    %549 = vmatprep.subr.mxu0 0.0
    %550 = vmatpush1.msra.mxu0 %v286
    %551 = vmatprep.subr.mxu0 0.0
    %552 = vmatpush1.msra.mxu0 %v287
    %553 = vmatprep.subr.mxu0 0.0
    %554 = vmatpush1.msra.mxu0 %v288
    %555 = vmatprep.subr.mxu0 0.0
    %556 = vmatpush1.msra.mxu0 %v289
    %557 = vmatprep.subr.mxu0 0.0
    %558 = vmatpush1.msra.mxu0 %v290
    %559 = vmatprep.subr.mxu0 0.0
    %560 = vmatpush1.msra.mxu0 %v291
    %561 = vmatprep.subr.mxu0 0.0
    %562 = vmatpush1.msra.mxu0 %v292
    %563 = vmatprep.subr.mxu0 0.0
    %564 = vmatpush1.msra.mxu0 %v293
    %565 = vmatprep.subr.mxu0 0.0
    %566 = vmatpush1.msra.mxu0 %v294
    %567 = vmatprep.subr.mxu0 0.0
    %568 = vmatpush1.msra.mxu0 %v295
    %569 = vmatprep.subr.mxu0 0.0
    %570 = vmatpush1.msra.mxu0 %v296
    %571 = vmatprep.subr.mxu0 0.0
    %572 = vmatpush1.msra.mxu0 %v297
    %573 = vmatprep.subr.mxu0 0.0
    %574 = vmatpush1.msra.mxu0 %v298
    %575 = vmatprep.subr.mxu0 0.0
    %576 = vmatpush1.msra.mxu0 %v299
    %577 = vmatprep.subr.mxu0 0.0
    %578 = vmatpush1.msra.mxu0 %v300
    %579 = vmatprep.subr.mxu0 0.0
    %580 = vmatpush1.msra.mxu0 %v301
    %581 = vmatprep.subr.mxu0 0.0
    %582 = vmatpush1.msra.mxu0 %v302
    %583 = vmatprep.subr.mxu0 0.0
    %584 = vmatpush1.msra.mxu0 %v303
    %585 = vmatprep.mubr.f32.mxu0 %v173
    %586 = vmatmul.mubr.f32.gmra.mrb[0].mxu0 %v172
    %v587 = vpop.f32.mrb[0].mxu0
    %v588 = vadd.f32 %v518, %v587
    %v589 = vpop.f32.mrb[0].mxu0
    %590 = vdwg.mxu0
    %v591 = vmax.f32 %v588, 0.0
    %v592 = vld [vmem:[%s5] sm:$0xff]
    %v593 = vld [vmem:[%s5 + $0x8] sm:$0xff]
    %v594 = vld [vmem:[%s5 + $0x10] sm:$0xff]
    %v595 = vld [vmem:[%s5 + $0x18] sm:$0x3f]
    %v596 = vld [vmem:[%s6] sm:$0x1]
    %v598 = vlaneseq
    %v599 = vshrl.u32 %v598, 7
    %v600 = vsub.s32 0, %v599
    %v601 = vrot.slane %v596, %v600
    %vm603 = vcmask 244736
    %v605 = vsel %vm603, %v591, 0
    %vm607 = vcmask 1045504
    %v609 = vsel %vm607, %v595, 0
    %611 = vmatprep.subr.mxu0 0.0
    %612 = vmatpush1.msra.mxu0 %v592
    %613 = vmatprep.subr.mxu0 0.0
    %614 = vmatpush1.msra.mxu0 %v593
    %615 = vmatprep.subr.mxu0 0.0
    %616 = vmatpush1.msra.mxu0 %v594
    %617 = vmatprep.subr.mxu0 0.0
    %618 = vmatpush1.msra.mxu0 %v609
    %619 = vmatprep.subr.mxu0 0.0
    %620 = vmatpush1.msra.mxu0 0.0
    %621 = vmatprep.subr.mxu0 0.0
    %622 = vmatpush1.msra.mxu0 0.0
    %623 = vmatprep.subr.mxu0 0.0
    %624 = vmatpush1.msra.mxu0 0.0
    %625 = vmatprep.subr.mxu0 0.0
    %626 = vmatpush1.msra.mxu0 0.0
    %627 = vmatprep.subr.mxu0 0.0
    %628 = vmatpush1.msra.mxu0 0.0
    %629 = vmatprep.subr.mxu0 0.0
    %630 = vmatpush1.msra.mxu0 0.0
    %631 = vmatprep.subr.mxu0 0.0
    %632 = vmatpush1.msra.mxu0 0.0
    %633 = vmatprep.subr.mxu0 0.0
    %634 = vmatpush1.msra.mxu0 0.0
    %635 = vmatprep.subr.mxu0 0.0
    %636 = vmatpush1.msra.mxu0 0.0
    %637 = vmatprep.subr.mxu0 0.0
    %638 = vmatpush1.msra.mxu0 0.0
    %639 = vmatprep.subr.mxu0 0.0
    %640 = vmatpush1.msra.mxu0 0.0
    %641 = vmatprep.subr.mxu0 0.0
    %642 = vmatpush1.msra.mxu0 0.0
    %643 = vmatprep.subr.mxu0 0.0
    %644 = vmatpush1.msra.mxu0 0.0
    %645 = vmatprep.subr.mxu0 0.0
    %646 = vmatpush1.msra.mxu0 0.0
    %647 = vmatprep.subr.mxu0 0.0
    %648 = vmatpush1.msra.mxu0 0.0
    %649 = vmatprep.subr.mxu0 0.0
    %650 = vmatpush1.msra.mxu0 0.0
    %651 = vmatprep.subr.mxu0 0.0
    %652 = vmatpush1.msra.mxu0 0.0
    %653 = vmatprep.subr.mxu0 0.0
    %654 = vmatpush1.msra.mxu0 0.0
    %655 = vmatprep.subr.mxu0 0.0
    %656 = vmatpush1.msra.mxu0 0.0
    %657 = vmatprep.subr.mxu0 0.0
    %658 = vmatpush1.msra.mxu0 0.0
    %659 = vmatprep.subr.mxu0 0.0
    %660 = vmatpush1.msra.mxu0 0.0
    %661 = vmatprep.subr.mxu0 0.0
    %662 = vmatpush1.msra.mxu0 0.0
    %663 = vmatprep.subr.mxu0 0.0
    %664 = vmatpush1.msra.mxu0 0.0
    %665 = vmatprep.subr.mxu0 0.0
    %666 = vmatpush1.msra.mxu0 0.0
    %667 = vmatprep.subr.mxu0 0.0
    %668 = vmatpush1.msra.mxu0 0.0
    %669 = vmatprep.subr.mxu0 0.0
    %670 = vmatpush1.msra.mxu0 0.0
    %671 = vmatprep.subr.mxu0 0.0
    %672 = vmatpush1.msra.mxu0 0.0
    %673 = vmatprep.subr.mxu0 0.0
    %674 = vmatpush1.msra.mxu0 0.0
    %675 = vmatprep.mubr.f32.mxu0 0.0
    %676 = vmatmul.mubr.f32.gmra.mrb[0].mxu0 %v605
    %v677 = vpop.f32.mrb[0].mxu0
    %v678 = vadd.f32 %v601, %v677
    %v679 = vpop.f32.mrb[0].mxu0
    %680 = vdwg.mxu0
    %vm681 = vcmask 74752
    %682 = vst.msk [vmem:[#allocation7] sm:$0x3] %vm681, %v678
    // Predicated region
    $region38: #{hybrid_forward.1} parent=1 // pred_check
      _
    $region39: #{hybrid_forward.1} parent=1 // pred_check_branch
      %684 = sbr.rel (0) target = $region41
    $region40: #{hybrid_forward.1} parent=1 // pred_region
      %s686 = ssub.s32 32, 32
      %687 = vsyncadd [#allocation3], %s686
      %s689 = sshll.u32 [#allocation7], 4
      %s690 = int_to_ptr.vmem [resolvable:$true] %s689
      %692 = dma.vmem_to_hbm [thread:$0]  %s690, 32, %s7, [#allocation3]
    $region41: #{hybrid_forward.1} parent=1 // pred_fallthru
      _
    // Predicated region
    $region42: #{hybrid_forward.1} parent=1 // pred_check
      _
    $region43: #{hybrid_forward.1} parent=1 // pred_check_branch
      %694 = sbr.rel (0) target = $region45
    $region44: #{hybrid_forward.1} parent=1 // pred_region
      %695 = dma.done [#allocation3], 32
    $region45: #{hybrid_forward.1} parent=1 // pred_fallthru
      _
    %696 = vsyncpa [#allocation3], 1
    %697 = vsyncpa [#allocation4], 1
    %698 = vsyncpa [#allocation6], 1

</llo_original>
